<compile_context>
chip_gen: v6e
topology: v6e:2x2x1
jax: 0.10.0
libtpu: 0.0.40
codegen_flags: <defaults>
</compile_context>

<pallas_src>
import math
from functools import partial

import jax
import jax.numpy as jnp
from jax.experimental import pallas as pl
from jax.experimental.pallas import tpu as pltpu


def _round_up(x, m):
    return ((x + m - 1) // m) * m


def _apply_act(y, act):
    if act == "relu":
        return jnp.maximum(y, 0.0)
    return jnp.tanh(y)


def _pick_bb(B):
    """Batch block size: multiple of 8 (or == B) so the (bb, H_pad) output block
    satisfies the (8, 128) tiling rule; capped at 32; >= 2 grid steps when possible
    so the 'parallel' batch axis can split across the 2 TensorCores on v7x."""
    if B <= 8:
        return B
    bb = min(32, (B + 1) // 2)
    bb -= bb % 8
    return max(bb, 8)


# ---------------------------------------------------------------------------
# Fused kernel.  Per batch block of bb images:
#   conv_i = act(Wc @ patches_i + bc)            (cout, P)   -> VMEM scratch
#   h1     = act( sum_c conv[:, c, :] @ W1[c] + b1 )          (bb, H_pad)
#   out    = act( h1 @ W2 + b2 )                              (bb, H_pad)
# The per-channel fc1 sum is exactly flatten(conv) @ W1.T (K-chunked by channel),
# so no in-kernel reshape/relayout is ever needed.
# ---------------------------------------------------------------------------
def _make_fused_kernel(bb, cout, P, H_pad, act):
    def kernel(p_ref, wc_ref, bc_ref, w1_ref, b1_ref, w2_ref, b2_ref, o_ref,
               conv_scr):
        wc = wc_ref[...]                                        # (cout, Ckk) f32
        bconv = jnp.broadcast_to(bc_ref[...], (cout, P))        # hoisted broadcast

        # --- conv stage: one MXU matmul per image, result stays in VMEM ---
        for i in range(bb):                                     # static unroll
            x = p_ref[i].astype(jnp.float32)                    # (Ckk, P)
            y = jnp.dot(wc, x, preferred_element_type=jnp.float32)
            conv_scr[i] = _apply_act(y + bconv, act)            # (cout, P)

        # --- fc1: sum over output channels (== flatten @ W1.T) ---
        h = jnp.dot(conv_scr[:, 0, :], w1_ref[0],
                    preferred_element_type=jnp.float32)          # (bb, H_pad)
        for c in range(1, cout):                                 # static unroll
            h = h + jnp.dot(conv_scr[:, c, :], w1_ref[c],
                            preferred_element_type=jnp.float32)
        h = _apply_act(h + b1_ref[...], act)

        # --- fc2 ---
        h = jnp.dot(h, w2_ref[...], preferred_element_type=jnp.float32)
        h = _apply_act(h + b2_ref[...], act)
        o_ref[...] = h.astype(o_ref.dtype)

    return kernel


def _fused_call(patches, wc, bc, w1, b1, w2, b2, *, act, bb):
    B, Ckk, P = patches.shape
    cout = wc.shape[0]
    H_pad = w1.shape[2]
    nblk = pl.cdiv(B, bb)
    return pl.pallas_call(
        _make_fused_kernel(bb, cout, P, H_pad, act),
        out_shape=jax.ShapeDtypeStruct((B, H_pad), jnp.float32),
        grid_spec=pltpu.PrefetchScalarGridSpec(
            num_scalar_prefetch=0,
            grid=(nblk,),
            in_specs=[
                pl.BlockSpec((bb, Ckk, P), lambda g: (g, 0, 0)),       # patches
                pl.BlockSpec((cout, Ckk), lambda g: (0, 0)),           # Wc (resident)
                pl.BlockSpec((cout, 1), lambda g: (0, 0)),             # bc
                pl.BlockSpec((cout, P, H_pad), lambda g: (0, 0, 0)),   # W1 (resident)
                pl.BlockSpec((1, H_pad), lambda g: (0, 0)),            # b1
                pl.BlockSpec((H_pad, H_pad), lambda g: (0, 0)),        # W2 (resident)
                pl.BlockSpec((1, H_pad), lambda g: (0, 0)),            # b2
            ],
            out_specs=pl.BlockSpec((bb, H_pad), lambda g: (g, 0)),
            scratch_shapes=[pltpu.VMEM((bb, cout, P), jnp.float32)],
        ),
        compiler_params=pltpu.CompilerParams(
            dimension_semantics=("parallel",),
            # Working set is ~6 MiB at bb=32 and these shapes; 48 MiB stays safely
            # under v7x's 64 MiB physical VMEM while giving v5e/v6e headroom.
            vmem_limit_bytes=48 * 1024 * 1024,
        ),
    )(patches, wc, bc, w1, b1, w2, b2)


# ---------------------------------------------------------------------------
# Host glue: im2col (unpadded, bf16), feature order (c, kh, kw) matching the
# conv-weight flatten, spatial order p = o1*O2 + o2 matching PyTorch's Flatten.
# ---------------------------------------------------------------------------
def _im2col(x, k, stride):
    B, C, D1, D2 = x.shape
    O1 = (D1 - k) // stride + 1
    O2 = (D2 - k) // stride + 1
    pats = []
    for kh in range(k):
        for kw in range(k):
            pats.append(x[:, :, kh:kh + stride * O1:stride, kw:kw + stride * O2:stride])
    p = jnp.stack(pats, axis=2)                       # (B, C, k*k, O1, O2)
    return p.reshape(B, C * k * k, O1 * O2)           # feature = c*k*k + kh*k + kw


@partial(jax.jit, static_argnames=("k", "stride", "hidden", "act"))
def _forward(x, wc, bc, w1, b1, w2, b2, *, k, stride, hidden, act):
    B = x.shape[0]
    # bf16 patches halve HBM traffic of the dominant tensor; exact for integer
    # pixel values since the 1/255 scale is folded into the conv weight.
    patches = _im2col(x.astype(jnp.float32), k, stride).astype(jnp.bfloat16)
    bb = _pick_bb(B)
    out = _fused_call(patches, wc, bc, w1, b1, w2, b2, act=act, bb=bb)
    return out[:, :hidden]


# ---------------------------------------------------------------------------
# Init helpers (match PyTorch's orthogonal_/xavier_uniform_ with gain).
# ---------------------------------------------------------------------------
def _orthogonal(key, shape, gain):
    return jax.nn.initializers.orthogonal(scale=gain)(key, shape, jnp.float32)


def _xavier_uniform(key, shape, gain, fan_in, fan_out):
    a = gain * math.sqrt(6.0 / (fan_in + fan_out))
    return jax.random.uniform(key, shape, jnp.float32, minval=-a, maxval=a)


class CNNLayerPallas:
    def __init__(self, obs_shape, hidden_size, use_orthogonal, use_ReLU,
                 kernel_size=3, stride=1, *, key):
        C, D1, D2 = obs_shape
        k = kernel_size
        self.k, self.stride = k, stride
        self.act = "relu" if use_ReLU else "tanh"
        self.hidden = hidden_size
        gain = math.sqrt(2.0) if use_ReLU else 5.0 / 3.0   # calculate_gain(relu/tanh)

        cout = hidden_size // 2
        O1 = (D1 - k) // stride + 1
        O2 = (D2 - k) // stride + 1
        P = O1 * O2
        F = cout * P
        H_pad = _round_up(hidden_size, 128)

        k1, k2, k3 = jax.random.split(key, 3)
        if use_orthogonal:
            wc = _orthogonal(k1, (cout, C * k * k), gain)
            w1 = _orthogonal(k2, (hidden_size, F), gain)
            w2 = _orthogonal(k3, (hidden_size, hidden_size), gain)
        else:
            wc = _xavier_uniform(k1, (cout, C * k * k), gain, C * k * k, cout * k * k)
            w1 = _xavier_uniform(k2, (hidden_size, F), gain, F, hidden_size)
            w2 = _xavier_uniform(k3, (hidden_size, hidden_size), gain,
                                 hidden_size, hidden_size)

        # Conv weight with 1/255 prescale folded in (equivalent to scaling the input).
        self.wc = (wc * (1.0 / 255.0)).astype(jnp.float32)      # (cout, C*k*k)
        self.bc = jnp.zeros((cout, 1), jnp.float32)

        # fc1 as (cout, P, H_pad): chunk c multiplies conv channel c, matching the
        # kernel's per-channel accumulation (== PyTorch flatten (c, p) order @ W1.T).
        # Padded hidden columns are exactly zero.
        w1_3d = jnp.zeros((cout, P, H_pad), jnp.float32)
        self.w1 = w1_3d.at[:, :, :hidden_size].set(w1.T.reshape(cout, P, hidden_size))
        self.b1 = jnp.zeros((1, H_pad), jnp.float32)

        self.w2 = jnp.zeros((H_pad, H_pad), jnp.float32).at[
            :hidden_size, :hidden_size].set(w2.T)
        self.b2 = jnp.zeros((1, H_pad), jnp.float32)

    def __call__(self, x):
        return _forward(x, self.wc, self.bc, self.w1, self.b1, self.w2, self.b2,
                        k=self.k, stride=self.stride, hidden=self.hidden,
                        act=self.act)


class CNNBasePallas:
    """Mirrors CNNBase: thin wrapper around CNNLayerPallas."""

    def __init__(self, args, obs_shape, *, key):
        self.hidden_size = args["hidden_size"]
        self.cnn = CNNLayerPallas(obs_shape, self.hidden_size,
                                  args["use_orthogonal"], args["use_ReLU"], key=key)

    def __call__(self, x):
        return self.cnn(x)


if __name__ == "__main__":
    B, C, D1, D2 = 2, 4, 16, 16
    hidden = 32

    key = jax.random.PRNGKey(0)
    pkey, xkey = jax.random.split(key)

    args = dict(hidden_size=hidden, use_orthogonal=True, use_ReLU=True)
    model = CNNBasePallas(args, (C, D1, D2), key=pkey)

    x = jax.random.uniform(xkey, (B, C, D1, D2), minval=0.0, maxval=255.0,
                           dtype=jnp.float32)

    out = model(x)
    jax.block_until_ready(out)
    assert out.shape == (B, hidden), out.shape
    assert out.dtype == jnp.float32
    assert bool(jnp.all(jnp.isfinite(out)))
    print("KERNEL_OK")
</pallas_src>

<mosaic_0001>
module attributes {stable_mosaic.version = 11 : i64} {
  func.func @kernel(%arg0: i32, %arg1: memref<2x36x196xbf16, #tpu.memory_space<vmem>>, %arg2: memref<16x36xf32, #tpu.memory_space<vmem>>, %arg3: memref<16x1xf32, #tpu.memory_space<vmem>>, %arg4: memref<16x196x128xf32, #tpu.memory_space<vmem>>, %arg5: memref<1x128xf32, #tpu.memory_space<vmem>>, %arg6: memref<128x128xf32, #tpu.memory_space<vmem>>, %arg7: memref<1x128xf32, #tpu.memory_space<vmem>>, %arg8: memref<2x128xf32, #tpu.memory_space<vmem>>, %arg9: memref<2x16x196xf32, #tpu.memory_space<vmem>>) attributes {dimension_semantics = [#tpu.dimension_semantics<parallel>], iteration_bounds = array<i64: 1>, scalar_prefetch = 0 : i64, scratch_operands = 1 : i64, tpu.core_type = #tpu.core_type<tc>, window_params = [{transform_indices = @transform_0, window_bounds = array<i64: 2, 36, 196>}, {pipeline_mode = #tpu.pipeline_mode<synchronous>, transform_indices = @transform_1, window_bounds = array<i64: 16, 36>}, {pipeline_mode = #tpu.pipeline_mode<synchronous>, transform_indices = @transform_2, window_bounds = array<i64: 16, 1>}, {pipeline_mode = #tpu.pipeline_mode<synchronous>, transform_indices = @transform_3, window_bounds = array<i64: 16, 196, 128>}, {pipeline_mode = #tpu.pipeline_mode<synchronous>, transform_indices = @transform_4, window_bounds = array<i64: 1, 128>}, {pipeline_mode = #tpu.pipeline_mode<synchronous>, transform_indices = @transform_5, window_bounds = array<i64: 128, 128>}, {pipeline_mode = #tpu.pipeline_mode<synchronous>, transform_indices = @transform_6, window_bounds = array<i64: 1, 128>}, {transform_indices = @transform_7, window_bounds = array<i64: 2, 128>}]} {
    %c0 = arith.constant 0 : index
    %c0_0 = arith.constant 0 : index
    %0 = vector.load %arg2[%c0, %c0_0] : memref<16x36xf32, #tpu.memory_space<vmem>>, vector<16x36xf32>
    %c0_1 = arith.constant 0 : index
    %c0_2 = arith.constant 0 : index
    %1 = vector.load %arg3[%c0_1, %c0_2] : memref<16x1xf32, #tpu.memory_space<vmem>>, vector<16x1xf32>
    %2 = vector.shape_cast %1 : vector<16x1xf32> to vector<16x1xf32>
    %3 = vector.broadcast %2 : vector<16x1xf32> to vector<16x196xf32>
    %c0_3 = arith.constant 0 : index
    %c0_4 = arith.constant 0 : index
    %c0_5 = arith.constant 0 : index
    %4 = vector.load %arg1[%c0_3, %c0_4, %c0_5] : memref<2x36x196xbf16, #tpu.memory_space<vmem>>, vector<1x36x196xbf16>
    %5 = vector.shape_cast %4 : vector<1x36x196xbf16> to vector<36x196xbf16>
    %6 = arith.extf %5 : vector<36x196xbf16> to vector<36x196xf32>
    %cst = arith.constant dense<0.000000e+00> : vector<16x196xf32>
    %7 = tpu.matmul %0, %6, %cst {dimension_numbers = #tpu.dot_dimension_numbers<[1], [0], [0], [1], [0, 0, 1, 1], [], []>} : vector<16x36xf32>, vector<36x196xf32>, vector<16x196xf32> -> vector<16x196xf32>
    %8 = arith.addf %7, %3 : vector<16x196xf32>
    %cst_6 = arith.constant 0.000000e+00 : f32
    %9 = vector.broadcast %cst_6 : f32 to vector<16x196xf32>
    %10 = arith.maximumf %8, %9 : vector<16x196xf32>
    %c0_7 = arith.constant 0 : index
    %c0_8 = arith.constant 0 : index
    %c0_9 = arith.constant 0 : index
    %11 = vector.load %arg9[%c0_7, %c0_8, %c0_9] : memref<2x16x196xf32, #tpu.memory_space<vmem>>, vector<1x16x196xf32>
    %12 = vector.shape_cast %11 : vector<1x16x196xf32> to vector<16x196xf32>
    %13 = vector.shape_cast %10 : vector<16x196xf32> to vector<1x16x196xf32>
    tpu.vector_store %arg9[%c0_7, %c0_8, %c0_9], %13 {strides = array<i32>} : memref<2x16x196xf32, #tpu.memory_space<vmem>>, vector<1x16x196xf32>,
    %c1 = arith.constant 1 : index
    %c0_10 = arith.constant 0 : index
    %c0_11 = arith.constant 0 : index
    %14 = vector.load %arg1[%c1, %c0_10, %c0_11] : memref<2x36x196xbf16, #tpu.memory_space<vmem>>, vector<1x36x196xbf16>
    %15 = vector.shape_cast %14 : vector<1x36x196xbf16> to vector<36x196xbf16>
    %16 = arith.extf %15 : vector<36x196xbf16> to vector<36x196xf32>
    %cst_12 = arith.constant dense<0.000000e+00> : vector<16x196xf32>
    %17 = tpu.matmul %0, %16, %cst_12 {dimension_numbers = #tpu.dot_dimension_numbers<[1], [0], [0], [1], [0, 0, 1, 1], [], []>} : vector<16x36xf32>, vector<36x196xf32>, vector<16x196xf32> -> vector<16x196xf32>
    %18 = arith.addf %17, %3 : vector<16x196xf32>
    %cst_13 = arith.constant 0.000000e+00 : f32
    %19 = vector.broadcast %cst_13 : f32 to vector<16x196xf32>
    %20 = arith.maximumf %18, %19 : vector<16x196xf32>
    %c1_14 = arith.constant 1 : index
    %c0_15 = arith.constant 0 : index
    %c0_16 = arith.constant 0 : index
    %21 = vector.load %arg9[%c1_14, %c0_15, %c0_16] : memref<2x16x196xf32, #tpu.memory_space<vmem>>, vector<1x16x196xf32>
    %22 = vector.shape_cast %21 : vector<1x16x196xf32> to vector<16x196xf32>
    %23 = vector.shape_cast %20 : vector<16x196xf32> to vector<1x16x196xf32>
    tpu.vector_store %arg9[%c1_14, %c0_15, %c0_16], %23 {strides = array<i32>} : memref<2x16x196xf32, #tpu.memory_space<vmem>>, vector<1x16x196xf32>,
    %c0_17 = arith.constant 0 : index
    %c0_18 = arith.constant 0 : index
    %c0_19 = arith.constant 0 : index
    %24 = vector.load %arg9[%c0_17, %c0_18, %c0_19] : memref<2x16x196xf32, #tpu.memory_space<vmem>>, vector<2x1x196xf32>
    %25 = vector.shape_cast %24 : vector<2x1x196xf32> to vector<2x196xf32>
    %c0_20 = arith.constant 0 : index
    %c0_21 = arith.constant 0 : index
    %c0_22 = arith.constant 0 : index
    %26 = vector.load %arg4[%c0_20, %c0_21, %c0_22] : memref<16x196x128xf32, #tpu.memory_space<vmem>>, vector<1x196x128xf32>
    %27 = vector.shape_cast %26 : vector<1x196x128xf32> to vector<196x128xf32>
    %cst_23 = arith.constant dense<0.000000e+00> : vector<2x128xf32>
    %28 = tpu.matmul %25, %27, %cst_23 {dimension_numbers = #tpu.dot_dimension_numbers<[1], [0], [0], [1], [0, 0, 1, 1], [], []>} : vector<2x196xf32>, vector<196x128xf32>, vector<2x128xf32> -> vector<2x128xf32>
    %c0_24 = arith.constant 0 : index
    %c1_25 = arith.constant 1 : index
    %c0_26 = arith.constant 0 : index
    %29 = vector.load %arg9[%c0_24, %c1_25, %c0_26] : memref<2x16x196xf32, #tpu.memory_space<vmem>>, vector<2x1x196xf32>
    %30 = vector.shape_cast %29 : vector<2x1x196xf32> to vector<2x196xf32>
    %c1_27 = arith.constant 1 : index
    %c0_28 = arith.constant 0 : index
    %c0_29 = arith.constant 0 : index
    %31 = vector.load %arg4[%c1_27, %c0_28, %c0_29] : memref<16x196x128xf32, #tpu.memory_space<vmem>>, vector<1x196x128xf32>
    %32 = vector.shape_cast %31 : vector<1x196x128xf32> to vector<196x128xf32>
    %cst_30 = arith.constant dense<0.000000e+00> : vector<2x128xf32>
    %33 = tpu.matmul %30, %32, %cst_30 {dimension_numbers = #tpu.dot_dimension_numbers<[1], [0], [0], [1], [0, 0, 1, 1], [], []>} : vector<2x196xf32>, vector<196x128xf32>, vector<2x128xf32> -> vector<2x128xf32>
    %34 = arith.addf %28, %33 : vector<2x128xf32>
    %c0_31 = arith.constant 0 : index
    %c2 = arith.constant 2 : index
    %c0_32 = arith.constant 0 : index
    %35 = vector.load %arg9[%c0_31, %c2, %c0_32] : memref<2x16x196xf32, #tpu.memory_space<vmem>>, vector<2x1x196xf32>
    %36 = vector.shape_cast %35 : vector<2x1x196xf32> to vector<2x196xf32>
    %c2_33 = arith.constant 2 : index
    %c0_34 = arith.constant 0 : index
    %c0_35 = arith.constant 0 : index
    %37 = vector.load %arg4[%c2_33, %c0_34, %c0_35] : memref<16x196x128xf32, #tpu.memory_space<vmem>>, vector<1x196x128xf32>
    %38 = vector.shape_cast %37 : vector<1x196x128xf32> to vector<196x128xf32>
    %cst_36 = arith.constant dense<0.000000e+00> : vector<2x128xf32>
    %39 = tpu.matmul %36, %38, %cst_36 {dimension_numbers = #tpu.dot_dimension_numbers<[1], [0], [0], [1], [0, 0, 1, 1], [], []>} : vector<2x196xf32>, vector<196x128xf32>, vector<2x128xf32> -> vector<2x128xf32>
    %40 = arith.addf %34, %39 : vector<2x128xf32>
    %c0_37 = arith.constant 0 : index
    %c3 = arith.constant 3 : index
    %c0_38 = arith.constant 0 : index
    %41 = vector.load %arg9[%c0_37, %c3, %c0_38] : memref<2x16x196xf32, #tpu.memory_space<vmem>>, vector<2x1x196xf32>
    %42 = vector.shape_cast %41 : vector<2x1x196xf32> to vector<2x196xf32>
    %c3_39 = arith.constant 3 : index
    %c0_40 = arith.constant 0 : index
    %c0_41 = arith.constant 0 : index
    %43 = vector.load %arg4[%c3_39, %c0_40, %c0_41] : memref<16x196x128xf32, #tpu.memory_space<vmem>>, vector<1x196x128xf32>
    %44 = vector.shape_cast %43 : vector<1x196x128xf32> to vector<196x128xf32>
    %cst_42 = arith.constant dense<0.000000e+00> : vector<2x128xf32>
    %45 = tpu.matmul %42, %44, %cst_42 {dimension_numbers = #tpu.dot_dimension_numbers<[1], [0], [0], [1], [0, 0, 1, 1], [], []>} : vector<2x196xf32>, vector<196x128xf32>, vector<2x128xf32> -> vector<2x128xf32>
    %46 = arith.addf %40, %45 : vector<2x128xf32>
    %c0_43 = arith.constant 0 : index
    %c4 = arith.constant 4 : index
    %c0_44 = arith.constant 0 : index
    %47 = vector.load %arg9[%c0_43, %c4, %c0_44] : memref<2x16x196xf32, #tpu.memory_space<vmem>>, vector<2x1x196xf32>
    %48 = vector.shape_cast %47 : vector<2x1x196xf32> to vector<2x196xf32>
    %c4_45 = arith.constant 4 : index
    %c0_46 = arith.constant 0 : index
    %c0_47 = arith.constant 0 : index
    %49 = vector.load %arg4[%c4_45, %c0_46, %c0_47] : memref<16x196x128xf32, #tpu.memory_space<vmem>>, vector<1x196x128xf32>
    %50 = vector.shape_cast %49 : vector<1x196x128xf32> to vector<196x128xf32>
    %cst_48 = arith.constant dense<0.000000e+00> : vector<2x128xf32>
    %51 = tpu.matmul %48, %50, %cst_48 {dimension_numbers = #tpu.dot_dimension_numbers<[1], [0], [0], [1], [0, 0, 1, 1], [], []>} : vector<2x196xf32>, vector<196x128xf32>, vector<2x128xf32> -> vector<2x128xf32>
    %52 = arith.addf %46, %51 : vector<2x128xf32>
    %c0_49 = arith.constant 0 : index
    %c5 = arith.constant 5 : index
    %c0_50 = arith.constant 0 : index
    %53 = vector.load %arg9[%c0_49, %c5, %c0_50] : memref<2x16x196xf32, #tpu.memory_space<vmem>>, vector<2x1x196xf32>
    %54 = vector.shape_cast %53 : vector<2x1x196xf32> to vector<2x196xf32>
    %c5_51 = arith.constant 5 : index
    %c0_52 = arith.constant 0 : index
    %c0_53 = arith.constant 0 : index
    %55 = vector.load %arg4[%c5_51, %c0_52, %c0_53] : memref<16x196x128xf32, #tpu.memory_space<vmem>>, vector<1x196x128xf32>
    %56 = vector.shape_cast %55 : vector<1x196x128xf32> to vector<196x128xf32>
    %cst_54 = arith.constant dense<0.000000e+00> : vector<2x128xf32>
    %57 = tpu.matmul %54, %56, %cst_54 {dimension_numbers = #tpu.dot_dimension_numbers<[1], [0], [0], [1], [0, 0, 1, 1], [], []>} : vector<2x196xf32>, vector<196x128xf32>, vector<2x128xf32> -> vector<2x128xf32>
    %58 = arith.addf %52, %57 : vector<2x128xf32>
    %c0_55 = arith.constant 0 : index
    %c6 = arith.constant 6 : index
    %c0_56 = arith.constant 0 : index
    %59 = vector.load %arg9[%c0_55, %c6, %c0_56] : memref<2x16x196xf32, #tpu.memory_space<vmem>>, vector<2x1x196xf32>
    %60 = vector.shape_cast %59 : vector<2x1x196xf32> to vector<2x196xf32>
    %c6_57 = arith.constant 6 : index
    %c0_58 = arith.constant 0 : index
    %c0_59 = arith.constant 0 : index
    %61 = vector.load %arg4[%c6_57, %c0_58, %c0_59] : memref<16x196x128xf32, #tpu.memory_space<vmem>>, vector<1x196x128xf32>
    %62 = vector.shape_cast %61 : vector<1x196x128xf32> to vector<196x128xf32>
    %cst_60 = arith.constant dense<0.000000e+00> : vector<2x128xf32>
    %63 = tpu.matmul %60, %62, %cst_60 {dimension_numbers = #tpu.dot_dimension_numbers<[1], [0], [0], [1], [0, 0, 1, 1], [], []>} : vector<2x196xf32>, vector<196x128xf32>, vector<2x128xf32> -> vector<2x128xf32>
    %64 = arith.addf %58, %63 : vector<2x128xf32>
    %c0_61 = arith.constant 0 : index
    %c7 = arith.constant 7 : index
    %c0_62 = arith.constant 0 : index
    %65 = vector.load %arg9[%c0_61, %c7, %c0_62] : memref<2x16x196xf32, #tpu.memory_space<vmem>>, vector<2x1x196xf32>
    %66 = vector.shape_cast %65 : vector<2x1x196xf32> to vector<2x196xf32>
    %c7_63 = arith.constant 7 : index
    %c0_64 = arith.constant 0 : index
    %c0_65 = arith.constant 0 : index
    %67 = vector.load %arg4[%c7_63, %c0_64, %c0_65] : memref<16x196x128xf32, #tpu.memory_space<vmem>>, vector<1x196x128xf32>
    %68 = vector.shape_cast %67 : vector<1x196x128xf32> to vector<196x128xf32>
    %cst_66 = arith.constant dense<0.000000e+00> : vector<2x128xf32>
    %69 = tpu.matmul %66, %68, %cst_66 {dimension_numbers = #tpu.dot_dimension_numbers<[1], [0], [0], [1], [0, 0, 1, 1], [], []>} : vector<2x196xf32>, vector<196x128xf32>, vector<2x128xf32> -> vector<2x128xf32>
    %70 = arith.addf %64, %69 : vector<2x128xf32>
    %c0_67 = arith.constant 0 : index
    %c8 = arith.constant 8 : index
    %c0_68 = arith.constant 0 : index
    %71 = vector.load %arg9[%c0_67, %c8, %c0_68] : memref<2x16x196xf32, #tpu.memory_space<vmem>>, vector<2x1x196xf32>
    %72 = vector.shape_cast %71 : vector<2x1x196xf32> to vector<2x196xf32>
    %c8_69 = arith.constant 8 : index
    %c0_70 = arith.constant 0 : index
    %c0_71 = arith.constant 0 : index
    %73 = vector.load %arg4[%c8_69, %c0_70, %c0_71] : memref<16x196x128xf32, #tpu.memory_space<vmem>>, vector<1x196x128xf32>
    %74 = vector.shape_cast %73 : vector<1x196x128xf32> to vector<196x128xf32>
    %cst_72 = arith.constant dense<0.000000e+00> : vector<2x128xf32>
    %75 = tpu.matmul %72, %74, %cst_72 {dimension_numbers = #tpu.dot_dimension_numbers<[1], [0], [0], [1], [0, 0, 1, 1], [], []>} : vector<2x196xf32>, vector<196x128xf32>, vector<2x128xf32> -> vector<2x128xf32>
    %76 = arith.addf %70, %75 : vector<2x128xf32>
    %c0_73 = arith.constant 0 : index
    %c9 = arith.constant 9 : index
    %c0_74 = arith.constant 0 : index
    %77 = vector.load %arg9[%c0_73, %c9, %c0_74] : memref<2x16x196xf32, #tpu.memory_space<vmem>>, vector<2x1x196xf32>
    %78 = vector.shape_cast %77 : vector<2x1x196xf32> to vector<2x196xf32>
    %c9_75 = arith.constant 9 : index
    %c0_76 = arith.constant 0 : index
    %c0_77 = arith.constant 0 : index
    %79 = vector.load %arg4[%c9_75, %c0_76, %c0_77] : memref<16x196x128xf32, #tpu.memory_space<vmem>>, vector<1x196x128xf32>
    %80 = vector.shape_cast %79 : vector<1x196x128xf32> to vector<196x128xf32>
    %cst_78 = arith.constant dense<0.000000e+00> : vector<2x128xf32>
    %81 = tpu.matmul %78, %80, %cst_78 {dimension_numbers = #tpu.dot_dimension_numbers<[1], [0], [0], [1], [0, 0, 1, 1], [], []>} : vector<2x196xf32>, vector<196x128xf32>, vector<2x128xf32> -> vector<2x128xf32>
    %82 = arith.addf %76, %81 : vector<2x128xf32>
    %c0_79 = arith.constant 0 : index
    %c10 = arith.constant 10 : index
    %c0_80 = arith.constant 0 : index
    %83 = vector.load %arg9[%c0_79, %c10, %c0_80] : memref<2x16x196xf32, #tpu.memory_space<vmem>>, vector<2x1x196xf32>
    %84 = vector.shape_cast %83 : vector<2x1x196xf32> to vector<2x196xf32>
    %c10_81 = arith.constant 10 : index
    %c0_82 = arith.constant 0 : index
    %c0_83 = arith.constant 0 : index
    %85 = vector.load %arg4[%c10_81, %c0_82, %c0_83] : memref<16x196x128xf32, #tpu.memory_space<vmem>>, vector<1x196x128xf32>
    %86 = vector.shape_cast %85 : vector<1x196x128xf32> to vector<196x128xf32>
    %cst_84 = arith.constant dense<0.000000e+00> : vector<2x128xf32>
    %87 = tpu.matmul %84, %86, %cst_84 {dimension_numbers = #tpu.dot_dimension_numbers<[1], [0], [0], [1], [0, 0, 1, 1], [], []>} : vector<2x196xf32>, vector<196x128xf32>, vector<2x128xf32> -> vector<2x128xf32>
    %88 = arith.addf %82, %87 : vector<2x128xf32>
    %c0_85 = arith.constant 0 : index
    %c11 = arith.constant 11 : index
    %c0_86 = arith.constant 0 : index
    %89 = vector.load %arg9[%c0_85, %c11, %c0_86] : memref<2x16x196xf32, #tpu.memory_space<vmem>>, vector<2x1x196xf32>
    %90 = vector.shape_cast %89 : vector<2x1x196xf32> to vector<2x196xf32>
    %c11_87 = arith.constant 11 : index
    %c0_88 = arith.constant 0 : index
    %c0_89 = arith.constant 0 : index
    %91 = vector.load %arg4[%c11_87, %c0_88, %c0_89] : memref<16x196x128xf32, #tpu.memory_space<vmem>>, vector<1x196x128xf32>
    %92 = vector.shape_cast %91 : vector<1x196x128xf32> to vector<196x128xf32>
    %cst_90 = arith.constant dense<0.000000e+00> : vector<2x128xf32>
    %93 = tpu.matmul %90, %92, %cst_90 {dimension_numbers = #tpu.dot_dimension_numbers<[1], [0], [0], [1], [0, 0, 1, 1], [], []>} : vector<2x196xf32>, vector<196x128xf32>, vector<2x128xf32> -> vector<2x128xf32>
    %94 = arith.addf %88, %93 : vector<2x128xf32>
    %c0_91 = arith.constant 0 : index
    %c12 = arith.constant 12 : index
    %c0_92 = arith.constant 0 : index
    %95 = vector.load %arg9[%c0_91, %c12, %c0_92] : memref<2x16x196xf32, #tpu.memory_space<vmem>>, vector<2x1x196xf32>
    %96 = vector.shape_cast %95 : vector<2x1x196xf32> to vector<2x196xf32>
    %c12_93 = arith.constant 12 : index
    %c0_94 = arith.constant 0 : index
    %c0_95 = arith.constant 0 : index
    %97 = vector.load %arg4[%c12_93, %c0_94, %c0_95] : memref<16x196x128xf32, #tpu.memory_space<vmem>>, vector<1x196x128xf32>
    %98 = vector.shape_cast %97 : vector<1x196x128xf32> to vector<196x128xf32>
    %cst_96 = arith.constant dense<0.000000e+00> : vector<2x128xf32>
    %99 = tpu.matmul %96, %98, %cst_96 {dimension_numbers = #tpu.dot_dimension_numbers<[1], [0], [0], [1], [0, 0, 1, 1], [], []>} : vector<2x196xf32>, vector<196x128xf32>, vector<2x128xf32> -> vector<2x128xf32>
    %100 = arith.addf %94, %99 : vector<2x128xf32>
    %c0_97 = arith.constant 0 : index
    %c13 = arith.constant 13 : index
    %c0_98 = arith.constant 0 : index
    %101 = vector.load %arg9[%c0_97, %c13, %c0_98] : memref<2x16x196xf32, #tpu.memory_space<vmem>>, vector<2x1x196xf32>
    %102 = vector.shape_cast %101 : vector<2x1x196xf32> to vector<2x196xf32>
    %c13_99 = arith.constant 13 : index
    %c0_100 = arith.constant 0 : index
    %c0_101 = arith.constant 0 : index
    %103 = vector.load %arg4[%c13_99, %c0_100, %c0_101] : memref<16x196x128xf32, #tpu.memory_space<vmem>>, vector<1x196x128xf32>
    %104 = vector.shape_cast %103 : vector<1x196x128xf32> to vector<196x128xf32>
    %cst_102 = arith.constant dense<0.000000e+00> : vector<2x128xf32>
    %105 = tpu.matmul %102, %104, %cst_102 {dimension_numbers = #tpu.dot_dimension_numbers<[1], [0], [0], [1], [0, 0, 1, 1], [], []>} : vector<2x196xf32>, vector<196x128xf32>, vector<2x128xf32> -> vector<2x128xf32>
    %106 = arith.addf %100, %105 : vector<2x128xf32>
    %c0_103 = arith.constant 0 : index
    %c14 = arith.constant 14 : index
    %c0_104 = arith.constant 0 : index
    %107 = vector.load %arg9[%c0_103, %c14, %c0_104] : memref<2x16x196xf32, #tpu.memory_space<vmem>>, vector<2x1x196xf32>
    %108 = vector.shape_cast %107 : vector<2x1x196xf32> to vector<2x196xf32>
    %c14_105 = arith.constant 14 : index
    %c0_106 = arith.constant 0 : index
    %c0_107 = arith.constant 0 : index
    %109 = vector.load %arg4[%c14_105, %c0_106, %c0_107] : memref<16x196x128xf32, #tpu.memory_space<vmem>>, vector<1x196x128xf32>
    %110 = vector.shape_cast %109 : vector<1x196x128xf32> to vector<196x128xf32>
    %cst_108 = arith.constant dense<0.000000e+00> : vector<2x128xf32>
    %111 = tpu.matmul %108, %110, %cst_108 {dimension_numbers = #tpu.dot_dimension_numbers<[1], [0], [0], [1], [0, 0, 1, 1], [], []>} : vector<2x196xf32>, vector<196x128xf32>, vector<2x128xf32> -> vector<2x128xf32>
    %112 = arith.addf %106, %111 : vector<2x128xf32>
    %c0_109 = arith.constant 0 : index
    %c15 = arith.constant 15 : index
    %c0_110 = arith.constant 0 : index
    %113 = vector.load %arg9[%c0_109, %c15, %c0_110] : memref<2x16x196xf32, #tpu.memory_space<vmem>>, vector<2x1x196xf32>
    %114 = vector.shape_cast %113 : vector<2x1x196xf32> to vector<2x196xf32>
    %c15_111 = arith.constant 15 : index
    %c0_112 = arith.constant 0 : index
    %c0_113 = arith.constant 0 : index
    %115 = vector.load %arg4[%c15_111, %c0_112, %c0_113] : memref<16x196x128xf32, #tpu.memory_space<vmem>>, vector<1x196x128xf32>
    %116 = vector.shape_cast %115 : vector<1x196x128xf32> to vector<196x128xf32>
    %cst_114 = arith.constant dense<0.000000e+00> : vector<2x128xf32>
    %117 = tpu.matmul %114, %116, %cst_114 {dimension_numbers = #tpu.dot_dimension_numbers<[1], [0], [0], [1], [0, 0, 1, 1], [], []>} : vector<2x196xf32>, vector<196x128xf32>, vector<2x128xf32> -> vector<2x128xf32>
    %118 = arith.addf %112, %117 : vector<2x128xf32>
    %c0_115 = arith.constant 0 : index
    %c0_116 = arith.constant 0 : index
    %119 = vector.load %arg5[%c0_115, %c0_116] : memref<1x128xf32, #tpu.memory_space<vmem>>, vector<1x128xf32>
    %120 = vector.broadcast %119 : vector<1x128xf32> to vector<2x128xf32>
    %121 = arith.addf %118, %120 : vector<2x128xf32>
    %cst_117 = arith.constant 0.000000e+00 : f32
    %122 = vector.broadcast %cst_117 : f32 to vector<2x128xf32>
    %123 = arith.maximumf %121, %122 : vector<2x128xf32>
    %c0_118 = arith.constant 0 : index
    %c0_119 = arith.constant 0 : index
    %124 = vector.load %arg6[%c0_118, %c0_119] : memref<128x128xf32, #tpu.memory_space<vmem>>, vector<128x128xf32>
    %cst_120 = arith.constant dense<0.000000e+00> : vector<2x128xf32>
    %125 = tpu.matmul %123, %124, %cst_120 {dimension_numbers = #tpu.dot_dimension_numbers<[1], [0], [0], [1], [0, 0, 1, 1], [], []>} : vector<2x128xf32>, vector<128x128xf32>, vector<2x128xf32> -> vector<2x128xf32>
    %c0_121 = arith.constant 0 : index
    %c0_122 = arith.constant 0 : index
    %126 = vector.load %arg7[%c0_121, %c0_122] : memref<1x128xf32, #tpu.memory_space<vmem>>, vector<1x128xf32>
    %127 = vector.broadcast %126 : vector<1x128xf32> to vector<2x128xf32>
    %128 = arith.addf %125, %127 : vector<2x128xf32>
    %cst_123 = arith.constant 0.000000e+00 : f32
    %129 = vector.broadcast %cst_123 : f32 to vector<2x128xf32>
    %130 = arith.maximumf %128, %129 : vector<2x128xf32>
    %c0_124 = arith.constant 0 : index
    %c0_125 = arith.constant 0 : index
    %131 = vector.load %arg8[%c0_124, %c0_125] : memref<2x128xf32, #tpu.memory_space<vmem>>, vector<2x128xf32>
    tpu.vector_store %arg8[%c0_124, %c0_125], %130 {strides = array<i32>} : memref<2x128xf32, #tpu.memory_space<vmem>>, vector<2x128xf32>,
    return
  }
  func.func @transform_0(%arg0: i32) -> (i32, i32, i32) {
    %c0_i32 = arith.constant 0 : i32
    %c0_i32_0 = arith.constant 0 : i32
    %c0_i32_1 = arith.constant 0 : i32
    return %arg0, %c0_i32, %c0_i32_0 : i32, i32, i32
  }
  func.func @transform_1(%arg0: i32) -> (i32, i32) {
    %c0_i32 = arith.constant 0 : i32
    %c0_i32_0 = arith.constant 0 : i32
    %c0_i32_1 = arith.constant 0 : i32
    return %c0_i32, %c0_i32_0 : i32, i32
  }
  func.func @transform_2(%arg0: i32) -> (i32, i32) {
    %c0_i32 = arith.constant 0 : i32
    %c0_i32_0 = arith.constant 0 : i32
    %c0_i32_1 = arith.constant 0 : i32
    return %c0_i32, %c0_i32_0 : i32, i32
  }
  func.func @transform_3(%arg0: i32) -> (i32, i32, i32) {
    %c0_i32 = arith.constant 0 : i32
    %c0_i32_0 = arith.constant 0 : i32
    %c0_i32_1 = arith.constant 0 : i32
    %c0_i32_2 = arith.constant 0 : i32
    return %c0_i32, %c0_i32_0, %c0_i32_1 : i32, i32, i32
  }
  func.func @transform_4(%arg0: i32) -> (i32, i32) {
    %c0_i32 = arith.constant 0 : i32
    %c0_i32_0 = arith.constant 0 : i32
    %c0_i32_1 = arith.constant 0 : i32
    return %c0_i32, %c0_i32_0 : i32, i32
  }
  func.func @transform_5(%arg0: i32) -> (i32, i32) {
    %c0_i32 = arith.constant 0 : i32
    %c0_i32_0 = arith.constant 0 : i32
    %c0_i32_1 = arith.constant 0 : i32
    return %c0_i32, %c0_i32_0 : i32, i32
  }
  func.func @transform_6(%arg0: i32) -> (i32, i32) {
    %c0_i32 = arith.constant 0 : i32
    %c0_i32_0 = arith.constant 0 : i32
    %c0_i32_1 = arith.constant 0 : i32
    return %c0_i32, %c0_i32_0 : i32, i32
  }
  func.func @transform_7(%arg0: i32) -> (i32, i32) {
    %c0_i32 = arith.constant 0 : i32
    %c0_i32_0 = arith.constant 0 : i32
    return %arg0, %c0_i32 : i32, i32
  }
}

</mosaic_0001>

<llo_original>
// kernel: _forward.1
$region0: #{_forward.1}
  #allocation0 [shape = 'u32[]', space=smem, size = 0x4, offset = 0x4, fixed_abs, tag = 'smem constant byte address 0x4 - core index']
  #allocation1 [shape = 'u32[144,128]{1,0:T(1,128)}', space=vmem, size = 0x12000, scoped, tag = 'internal scratch']
  #allocation2 [shape = 'f32[2,16,196]{2,1,0:T(8,128)}', space=vmem, size = 0x8000, scoped, tag = 'scratch operand']
  %s0 = inlined_call_operand.vmem [shape: bf16[2,36,196], index: 0, kind: input, shape index: {}]
  %s1 = inlined_call_operand.vmem [shape: f32[16,36], index: 1, kind: input, shape index: {}]
  %s2 = inlined_call_operand.vmem [shape: f32[16,1], index: 2, kind: input, shape index: {}]
  %s3 = inlined_call_operand.vmem [shape: f32[16,196,128], index: 3, kind: input, shape index: {}]
  %s4 = inlined_call_operand.vmem [shape: f32[1,128], index: 4, kind: input, shape index: {}]
  %s5 = inlined_call_operand.vmem [shape: f32[128,128], index: 5, kind: input, shape index: {}]
  %s6 = inlined_call_operand.vmem [shape: f32[1,128], index: 6, kind: input, shape index: {}]
  %s7 = inlined_call_operand.hbm [shape: f32[2,128], index: 7, kind: output, shape index: {}]
  %s8 = sld [smem:[#allocation0]]
  $region38: #{_forward.1} parent=0
    _
  %s10 = ssub.s32 1, %s8
  %s11 = scalar_select 0, %s10, %s8
  $region1: #{_forward.1} parent=0
    #allocation3 [shape = 'u8[1024]{0}', space=vmem, size = 0x400, scoped, tag = 'output window, operand 0, single buffered']
    #allocation4 [shape = 's32[1]{0}', space=sflag, size = 0x4, scoped, tag = 'scoped memory for _forward.1']
    %12 = vsyncpa [#allocation4], 0
    // Predicated region
    $region2: #{_forward.1} parent=1 // pred_check
      _
    $region3: #{_forward.1} parent=1 // pred_check_branch
      %14 = sbr.rel (0) target = $region5
    $region4: #{_forward.1} parent=1 // pred_region
      _
    $region5: #{_forward.1} parent=1 // pred_fallthru
      _
    // Predicated region
    $region6: #{_forward.1} parent=1 // pred_check
      _
    $region7: #{_forward.1} parent=1 // pred_check_branch
      %16 = sbr.rel (0) target = $region9
    $region8: #{_forward.1} parent=1 // pred_region
      _
    $region9: #{_forward.1} parent=1 // pred_fallthru
      _
    // Predicated region
    $region10: #{_forward.1} parent=1 // pred_check
      _
    $region11: #{_forward.1} parent=1 // pred_check_branch
      %18 = sbr.rel (0) target = $region13
    $region12: #{_forward.1} parent=1 // pred_region
      _
    $region13: #{_forward.1} parent=1 // pred_fallthru
      _
    // Predicated region
    $region14: #{_forward.1} parent=1 // pred_check
      _
    $region15: #{_forward.1} parent=1 // pred_check_branch
      %20 = sbr.rel (0) target = $region17
    $region16: #{_forward.1} parent=1 // pred_region
      _
    $region17: #{_forward.1} parent=1 // pred_fallthru
      _
    // Predicated region
    $region18: #{_forward.1} parent=1 // pred_check
      _
    $region19: #{_forward.1} parent=1 // pred_check_branch
      %22 = sbr.rel (0) target = $region21
    $region20: #{_forward.1} parent=1 // pred_region
      _
    $region21: #{_forward.1} parent=1 // pred_fallthru
      _
    // Predicated region
    $region22: #{_forward.1} parent=1 // pred_check
      _
    $region23: #{_forward.1} parent=1 // pred_check_branch
      %24 = sbr.rel (0) target = $region25
    $region24: #{_forward.1} parent=1 // pred_region
      _
    $region25: #{_forward.1} parent=1 // pred_fallthru
      _
    // Predicated region
    $region26: #{_forward.1} parent=1 // pred_check
      _
    $region27: #{_forward.1} parent=1 // pred_check_branch
      %26 = sbr.rel (0) target = $region29
    $region28: #{_forward.1} parent=1 // pred_region
      _
    $region29: #{_forward.1} parent=1 // pred_fallthru
      _
    %v27 = vld [vmem:[%s1] sm:$0xff]
    %v28 = vld [vmem:[%s1 + $0x8] sm:$0xff]
    %v29 = vld [vmem:[%s2] sm:$0xff]
    %v30 = vld [vmem:[%s2 + $0x8] sm:$0xff]
    %32 = vset.pattern.permute.xlu0 0
    %33 = vperm.xlu0 %32, %v29
    %v34 = vpop.permute.xlu0 %33
    %37 = vset.pattern.permute.xlu0 0
    %38 = vperm.xlu0 %37, %v30
    %v39 = vpop.permute.xlu0 %38
    %v41 = vld [vmem:[%s0] sm:$0xff]
    %v42 = vld [vmem:[%s0 + $0x8] sm:$0xff]
    %v43 = vld [vmem:[%s0 + $0x10] sm:$0xff]
    %v44 = vld [vmem:[%s0 + $0x18] sm:$0xff]
    %v45 = vld [vmem:[%s0 + $0x20] sm:$0x33]
    %v46 = vunpack.c.l.bf16 %v41
    %v47 = vunpack.c.h.bf16 %v41
    %v48 = vunpack.c.l.bf16 %v42
    %v49 = vunpack.c.h.bf16 %v42
    %v50 = vunpack.c.l.bf16 %v43
    %v51 = vunpack.c.h.bf16 %v43
    %v52 = vunpack.c.l.bf16 %v44
    %v53 = vunpack.c.h.bf16 %v44
    %v54 = vunpack.c.l.bf16 %v45
    %v55 = vunpack.c.h.bf16 %v45
    %vm56 = vcmask 293888
    %v58 = vsel %vm56, %v27, 0
    %v61 = vsel %vm56, %v28, 0
    %vm63 = vcmask 1043456
    %v65 = vsel %vm63, %v54, 0
    %v68 = vsel %vm63, %v55, 0
    %70 = vmatprep.subr.mxu0 0.0
    %71 = vmatpush1.msra.mxu0 0.0
    %72 = vmatprep.subr.mxu0 0.0
    %73 = vmatpush1.msra.mxu0 0.0
    %74 = vmatprep.subr.mxu0 0.0
    %75 = vmatpush1.msra.mxu0 0.0
    %76 = vmatprep.subr.mxu0 0.0
    %77 = vmatpush1.msra.mxu0 0.0
    %78 = vmatprep.subr.mxu0 0.0
    %79 = vmatpush1.msra.mxu0 0.0
    %80 = vmatprep.subr.mxu0 0.0
    %81 = vmatpush1.msra.mxu0 0.0
    %82 = vmatprep.subr.mxu0 0.0
    %83 = vmatpush1.msra.mxu0 0.0
    %84 = vmatprep.subr.mxu0 0.0
    %85 = vmatpush1.msra.mxu0 0.0
    %86 = vmatprep.subr.mxu0 0.0
    %87 = vmatpush1.msra.mxu0 0.0
    %88 = vmatprep.subr.mxu0 0.0
    %89 = vmatpush1.msra.mxu0 0.0
    %90 = vmatprep.subr.mxu0 0.0
    %91 = vmatpush1.msra.mxu0 0.0
    %92 = vmatprep.subr.mxu0 %v68
    %93 = vmatpush1.msra.mxu0 %v65
    %94 = vmatprep.subr.mxu0 %v53
    %95 = vmatpush1.msra.mxu0 %v52
    %96 = vmatprep.subr.mxu0 %v51
    %97 = vmatpush1.msra.mxu0 %v50
    %98 = vmatprep.subr.mxu0 %v49
    %99 = vmatpush1.msra.mxu0 %v48
    %100 = vmatprep.subr.mxu0 %v47
    %101 = vmatpush1.msra.mxu0 %v46
    %102 = vmatprep.subr.mxu0 0.0
    %103 = vmatpush2.msra.mxu0 0.0
    %104 = vmatprep.subr.mxu0 0.0
    %105 = vmatpush2.msra.mxu0 0.0
    %106 = vmatprep.subr.mxu0 0.0
    %107 = vmatpush2.msra.mxu0 0.0
    %108 = vmatprep.subr.mxu0 0.0
    %109 = vmatpush2.msra.mxu0 0.0
    %110 = vmatprep.subr.mxu0 0.0
    %111 = vmatpush2.msra.mxu0 0.0
    %112 = vmatprep.subr.mxu0 0.0
    %113 = vmatpush2.msra.mxu0 0.0
    %114 = vmatprep.subr.mxu0 0.0
    %115 = vmatpush2.msra.mxu0 0.0
    %116 = vmatprep.subr.mxu0 0.0
    %117 = vmatpush2.msra.mxu0 0.0
    %118 = vmatprep.subr.mxu0 0.0
    %119 = vmatpush2.msra.mxu0 0.0
    %120 = vmatprep.subr.mxu0 0.0
    %121 = vmatpush2.msra.mxu0 0.0
    %122 = vmatprep.subr.mxu0 0.0
    %123 = vmatpush2.msra.mxu0 0.0
    %124 = vmatprep.subr.mxu0 0.0
    %125 = vmatpush2.msra.mxu0 0.0
    %126 = vmatprep.subr.mxu0 0.0
    %127 = vmatpush2.msra.mxu0 0.0
    %128 = vmatprep.subr.mxu0 0.0
    %129 = vmatpush2.msra.mxu0 0.0
    %130 = vmatprep.subr.mxu0 0.0
    %131 = vmatpush2.msra.mxu0 0.0
    %132 = vmatprep.subr.mxu0 0.0
    %133 = vmatpush2.msra.mxu0 0.0
    %134 = vmatprep.mubr.f32.mxu0 0.0
    %135 = vmatmul.mubr.f32.gmra.mxu0 %v58
    %v136 = vpop.f32.mrf.mxu0
    %v137 = vadd.f32 %v34, %v136
    %v138 = vpop.f32.mrf.mxu0
    %v139 = vadd.f32 %v34, %v138
    %140 = vmatprep.mubr.f32.mxu0 0.0
    %141 = vmatmul.mubr.f32.gmra.mxu0 %v61
    %v142 = vpop.f32.mrf.mxu0
    %v143 = vadd.f32 %v39, %v142
    %v144 = vpop.f32.mrf.mxu0
    %v145 = vadd.f32 %v39, %v144
    %146 = vdwg.mxu0
    %v147 = vmax.f32 %v137, 0.0
    %v148 = vmax.f32 %v139, 0.0
    %v149 = vmax.f32 %v143, 0.0
    %v150 = vmax.f32 %v145, 0.0
    %151 = vst [vmem:[#allocation2] sm:$0xff] %v147
    %vm152 = vcmask 556032
    %153 = vst.msk [vmem:[#allocation2 + $0x8] sm:$0xff] %vm152, %v148
    %154 = vst [vmem:[#allocation2 + $0x10] sm:$0xff] %v149
    %155 = vst.msk [vmem:[#allocation2 + $0x18] sm:$0xff] %vm152, %v150
    %s156 = scalar_lea.vmem %s0, 40
    %v157 = vld [vmem:[%s156] sm:$0xff]
    %v158 = vld [vmem:[%s156 + $0x8] sm:$0xff]
    %v159 = vld [vmem:[%s156 + $0x10] sm:$0xff]
    %v160 = vld [vmem:[%s156 + $0x18] sm:$0xff]
    %v161 = vld [vmem:[%s156 + $0x20] sm:$0x33]
    %v162 = vunpack.c.l.bf16 %v157
    %v163 = vunpack.c.h.bf16 %v157
    %v164 = vunpack.c.l.bf16 %v158
    %v165 = vunpack.c.h.bf16 %v158
    %v166 = vunpack.c.l.bf16 %v159
    %v167 = vunpack.c.h.bf16 %v159
    %v168 = vunpack.c.l.bf16 %v160
    %v169 = vunpack.c.h.bf16 %v160
    %v170 = vunpack.c.l.bf16 %v161
    %v171 = vunpack.c.h.bf16 %v161
    %v173 = vsel %vm63, %v170, 0
    %v176 = vsel %vm63, %v171, 0
    %178 = vmatprep.subr.mxu0 0.0
    %179 = vmatpush1.msra.mxu0 0.0
    %180 = vmatprep.subr.mxu0 0.0
    %181 = vmatpush1.msra.mxu0 0.0
    %182 = vmatprep.subr.mxu0 0.0
    %183 = vmatpush1.msra.mxu0 0.0
    %184 = vmatprep.subr.mxu0 0.0
    %185 = vmatpush1.msra.mxu0 0.0
    %186 = vmatprep.subr.mxu0 0.0
    %187 = vmatpush1.msra.mxu0 0.0
    %188 = vmatprep.subr.mxu0 0.0
    %189 = vmatpush1.msra.mxu0 0.0
    %190 = vmatprep.subr.mxu0 0.0
    %191 = vmatpush1.msra.mxu0 0.0
    %192 = vmatprep.subr.mxu0 0.0
    %193 = vmatpush1.msra.mxu0 0.0
    %194 = vmatprep.subr.mxu0 0.0
    %195 = vmatpush1.msra.mxu0 0.0
    %196 = vmatprep.subr.mxu0 0.0
    %197 = vmatpush1.msra.mxu0 0.0
    %198 = vmatprep.subr.mxu0 0.0
    %199 = vmatpush1.msra.mxu0 0.0
    %200 = vmatprep.subr.mxu0 %v176
    %201 = vmatpush1.msra.mxu0 %v173
    %202 = vmatprep.subr.mxu0 %v169
    %203 = vmatpush1.msra.mxu0 %v168
    %204 = vmatprep.subr.mxu0 %v167
    %205 = vmatpush1.msra.mxu0 %v166
    %206 = vmatprep.subr.mxu0 %v165
    %207 = vmatpush1.msra.mxu0 %v164
    %208 = vmatprep.subr.mxu0 %v163
    %209 = vmatpush1.msra.mxu0 %v162
    %210 = vmatprep.subr.mxu0 0.0
    %211 = vmatpush2.msra.mxu0 0.0
    %212 = vmatprep.subr.mxu0 0.0
    %213 = vmatpush2.msra.mxu0 0.0
    %214 = vmatprep.subr.mxu0 0.0
    %215 = vmatpush2.msra.mxu0 0.0
    %216 = vmatprep.subr.mxu0 0.0
    %217 = vmatpush2.msra.mxu0 0.0
    %218 = vmatprep.subr.mxu0 0.0
    %219 = vmatpush2.msra.mxu0 0.0
    %220 = vmatprep.subr.mxu0 0.0
    %221 = vmatpush2.msra.mxu0 0.0
    %222 = vmatprep.subr.mxu0 0.0
    %223 = vmatpush2.msra.mxu0 0.0
    %224 = vmatprep.subr.mxu0 0.0
    %225 = vmatpush2.msra.mxu0 0.0
    %226 = vmatprep.subr.mxu0 0.0
    %227 = vmatpush2.msra.mxu0 0.0
    %228 = vmatprep.subr.mxu0 0.0
    %229 = vmatpush2.msra.mxu0 0.0
    %230 = vmatprep.subr.mxu0 0.0
    %231 = vmatpush2.msra.mxu0 0.0
    %232 = vmatprep.subr.mxu0 0.0
    %233 = vmatpush2.msra.mxu0 0.0
    %234 = vmatprep.subr.mxu0 0.0
    %235 = vmatpush2.msra.mxu0 0.0
    %236 = vmatprep.subr.mxu0 0.0
    %237 = vmatpush2.msra.mxu0 0.0
    %238 = vmatprep.subr.mxu0 0.0
    %239 = vmatpush2.msra.mxu0 0.0
    %240 = vmatprep.subr.mxu0 0.0
    %241 = vmatpush2.msra.mxu0 0.0
    %242 = vmatprep.mubr.f32.mxu0 0.0
    %243 = vmatmul.mubr.f32.gmra.mxu0 %v58
    %v244 = vpop.f32.mrf.mxu0
    %v245 = vadd.f32 %v34, %v244
    %v246 = vpop.f32.mrf.mxu0
    %v247 = vadd.f32 %v34, %v246
    %248 = vmatprep.mubr.f32.mxu0 0.0
    %249 = vmatmul.mubr.f32.gmra.mxu0 %v61
    %v250 = vpop.f32.mrf.mxu0
    %v251 = vadd.f32 %v39, %v250
    %v252 = vpop.f32.mrf.mxu0
    %v253 = vadd.f32 %v39, %v252
    %254 = vdwg.mxu0
    %v255 = vmax.f32 %v245, 0.0
    %v256 = vmax.f32 %v247, 0.0
    %v257 = vmax.f32 %v251, 0.0
    %v258 = vmax.f32 %v253, 0.0
    %s259 = scalar_lea.vmem [#allocation2], 32
    %260 = vst [vmem:[%s259] sm:$0xff] %v255
    %261 = vst.msk [vmem:[%s259 + $0x8] sm:$0xff] %vm152, %v256
    %262 = vst [vmem:[%s259 + $0x10] sm:$0xff] %v257
    %263 = vst.msk [vmem:[%s259 + $0x18] sm:$0xff] %vm152, %v258
    %v264 = vld [vmem:[#allocation2] ss:$8 sm:$0x3]
    %s265 = scalar_lea.vmem [#allocation2], 32
    %v266 = vld [vmem:[%s265] ss:$8 sm:$0x3]
    %v267 = vld [vmem:[%s3] sm:$0xff]
    %v268 = vld [vmem:[%s3 + $0x8] sm:$0xff]
    %v269 = vld [vmem:[%s3 + $0x10] sm:$0xff]
    %v270 = vld [vmem:[%s3 + $0x18] sm:$0xff]
    %v271 = vld [vmem:[%s3 + $0x20] sm:$0xff]
    %v272 = vld [vmem:[%s3 + $0x28] sm:$0xff]
    %v273 = vld [vmem:[%s3 + $0x30] sm:$0xff]
    %v274 = vld [vmem:[%s3 + $0x38] sm:$0xff]
    %v275 = vld [vmem:[%s3 + $0x40] sm:$0xff]
    %v276 = vld [vmem:[%s3 + $0x48] sm:$0xff]
    %v277 = vld [vmem:[%s3 + $0x50] sm:$0xff]
    %v278 = vld [vmem:[%s3 + $0x58] sm:$0xff]
    %v279 = vld [vmem:[%s3 + $0x60] sm:$0xff]
    %v280 = vld [vmem:[%s3 + $0x68] sm:$0xff]
    %v281 = vld [vmem:[%s3 + $0x70] sm:$0xff]
    %v282 = vld [vmem:[%s3 + $0x78] sm:$0xff]
    %v283 = vld [vmem:[%s3 + $0x80] sm:$0xff]
    %v284 = vld [vmem:[%s3 + $0x88] sm:$0xff]
    %v285 = vld [vmem:[%s3 + $0x90] sm:$0xff]
    %v286 = vld [vmem:[%s3 + $0x98] sm:$0xff]
    %v287 = vld [vmem:[%s3 + $0xa0] sm:$0xff]
    %v288 = vld [vmem:[%s3 + $0xa8] sm:$0xff]
    %v289 = vld [vmem:[%s3 + $0xb0] sm:$0xff]
    %v290 = vld [vmem:[%s3 + $0xb8] sm:$0xff]
    %v291 = vld [vmem:[%s3 + $0xc0] sm:$0xf]
    %s292 = scalar_lea.vmem [#allocation2], 1
    %v293 = vld [vmem:[%s292] ss:$8 sm:$0x3]
    %s294 = scalar_lea.vmem [#allocation2], 33
    %v295 = vld [vmem:[%s294] ss:$8 sm:$0x3]
    %s296 = scalar_lea.vmem %s3, 200
    %v297 = vld [vmem:[%s296] sm:$0xff]
    %v298 = vld [vmem:[%s296 + $0x8] sm:$0xff]
    %v299 = vld [vmem:[%s296 + $0x10] sm:$0xff]
    %v300 = vld [vmem:[%s296 + $0x18] sm:$0xff]
    %v301 = vld [vmem:[%s296 + $0x20] sm:$0xff]
    %v302 = vld [vmem:[%s296 + $0x28] sm:$0xff]
    %v303 = vld [vmem:[%s296 + $0x30] sm:$0xff]
    %v304 = vld [vmem:[%s296 + $0x38] sm:$0xff]
    %v305 = vld [vmem:[%s296 + $0x40] sm:$0xff]
    %v306 = vld [vmem:[%s296 + $0x48] sm:$0xff]
    %v307 = vld [vmem:[%s296 + $0x50] sm:$0xff]
    %v308 = vld [vmem:[%s296 + $0x58] sm:$0xff]
    %v309 = vld [vmem:[%s296 + $0x60] sm:$0xff]
    %v310 = vld [vmem:[%s296 + $0x68] sm:$0xff]
    %v311 = vld [vmem:[%s296 + $0x70] sm:$0xff]
    %v312 = vld [vmem:[%s296 + $0x78] sm:$0xff]
    %v313 = vld [vmem:[%s296 + $0x80] sm:$0xff]
    %v314 = vld [vmem:[%s296 + $0x88] sm:$0xff]
    %v315 = vld [vmem:[%s296 + $0x90] sm:$0xff]
    %v316 = vld [vmem:[%s296 + $0x98] sm:$0xff]
    %v317 = vld [vmem:[%s296 + $0xa0] sm:$0xff]
    %v318 = vld [vmem:[%s296 + $0xa8] sm:$0xff]
    %v319 = vld [vmem:[%s296 + $0xb0] sm:$0xff]
    %v320 = vld [vmem:[%s296 + $0xb8] sm:$0xff]
    %v321 = vld [vmem:[%s296 + $0xc0] sm:$0xf]
    %v324 = vcombine.low %v293, %v295
    %v326 = vunpack.c.l.s4 1966171168
    %v327 = vunpack.c.0.s8 %v326
    %v328 = vlaneseq
    %v329 = vshrl.u32 %v328, 7
    %v330 = vsub.s32 %v327, %v329
    %v331 = vrot.slane %v324, %v330
    %v332 = vcombine.high %v331, %v331
    %v334 = vunpack.c.l.s4 1966171168
    %v335 = vunpack.c.0.s8 %v334
    %v336 = vlaneseq
    %v337 = vshrl.u32 %v336, 7
    %v338 = vsub.s32 %v335, %v337
    %v339 = vrot.slane %v331, %v338
    %v341 = vunpack.c.l.s4 1966171168
    %v342 = vunpack.c.0.s8 %v341
    %v343 = vlaneseq
    %v344 = vshrl.u32 %v343, 7
    %v345 = vsub.s32 %v342, %v344
    %v346 = vrot.slane %v332, %v345
    %v348 = vsel %vm152, %v346, 0
    %v351 = vsel %vm63, %v321, 0
    %353 = vmatprep.subr.mxu0 0.0
    %354 = vmatpush1.msra.mxu0 %v312
    %355 = vmatprep.subr.mxu0 0.0
    %356 = vmatpush1.msra.mxu0 %v311
    %357 = vmatprep.subr.mxu0 0.0
    %358 = vmatpush1.msra.mxu0 %v310
    %359 = vmatprep.subr.mxu0 0.0
    %360 = vmatpush1.msra.mxu0 %v309
    %361 = vmatprep.subr.mxu0 0.0
    %362 = vmatpush1.msra.mxu0 %v308
    %363 = vmatprep.subr.mxu0 0.0
    %364 = vmatpush1.msra.mxu0 %v307
    %365 = vmatprep.subr.mxu0 0.0
    %366 = vmatpush1.msra.mxu0 %v306
    %367 = vmatprep.subr.mxu0 0.0
    %368 = vmatpush1.msra.mxu0 %v305
    %369 = vmatprep.subr.mxu0 0.0
    %370 = vmatpush1.msra.mxu0 %v304
    %371 = vmatprep.subr.mxu0 0.0
    %372 = vmatpush1.msra.mxu0 %v303
    %373 = vmatprep.subr.mxu0 0.0
    %374 = vmatpush1.msra.mxu0 %v302
    %375 = vmatprep.subr.mxu0 0.0
    %376 = vmatpush1.msra.mxu0 %v301
    %377 = vmatprep.subr.mxu0 0.0
    %378 = vmatpush1.msra.mxu0 %v300
    %379 = vmatprep.subr.mxu0 0.0
    %380 = vmatpush1.msra.mxu0 %v299
    %381 = vmatprep.subr.mxu0 0.0
    %382 = vmatpush1.msra.mxu0 %v298
    %383 = vmatprep.subr.mxu0 0.0
    %384 = vmatpush1.msra.mxu0 %v297
    %385 = vmatprep.subr.mxu0 0.0
    %386 = vmatpush2.msra.mxu0 0.0
    %387 = vmatprep.subr.mxu0 0.0
    %388 = vmatpush2.msra.mxu0 0.0
    %389 = vmatprep.subr.mxu0 0.0
    %390 = vmatpush2.msra.mxu0 0.0
    %391 = vmatprep.subr.mxu0 0.0
    %392 = vmatpush2.msra.mxu0 0.0
    %393 = vmatprep.subr.mxu0 0.0
    %394 = vmatpush2.msra.mxu0 0.0
    %395 = vmatprep.subr.mxu0 0.0
    %396 = vmatpush2.msra.mxu0 0.0
    %397 = vmatprep.subr.mxu0 0.0
    %398 = vmatpush2.msra.mxu0 0.0
    %399 = vmatprep.subr.mxu0 0.0
    %400 = vmatpush2.msra.mxu0 %v351
    %401 = vmatprep.subr.mxu0 0.0
    %402 = vmatpush2.msra.mxu0 %v320
    %403 = vmatprep.subr.mxu0 0.0
    %404 = vmatpush2.msra.mxu0 %v319
    %405 = vmatprep.subr.mxu0 0.0
    %406 = vmatpush2.msra.mxu0 %v318
    %407 = vmatprep.subr.mxu0 0.0
    %408 = vmatpush2.msra.mxu0 %v317
    %409 = vmatprep.subr.mxu0 0.0
    %410 = vmatpush2.msra.mxu0 %v316
    %411 = vmatprep.subr.mxu0 0.0
    %412 = vmatpush2.msra.mxu0 %v315
    %413 = vmatprep.subr.mxu0 0.0
    %414 = vmatpush2.msra.mxu0 %v314
    %415 = vmatprep.subr.mxu0 0.0
    %416 = vmatpush2.msra.mxu0 %v313
    %417 = vmatprep.mubr.f32.mxu0 %v348
    %418 = vmatmul.mubr.f32.gmra.mxu0 %v339
    %v419 = vpop.f32.mrf.mxu0
    %v420 = vadd.f32 0.0, %v419
    %v421 = vpop.f32.mrf.mxu0
    %422 = vdwg.mxu0
    %v425 = vcombine.low %v264, %v266
    %v427 = vunpack.c.l.s4 1966171168
    %v428 = vunpack.c.0.s8 %v427
    %v429 = vlaneseq
    %v430 = vshrl.u32 %v429, 7
    %v431 = vsub.s32 %v428, %v430
    %v432 = vrot.slane %v425, %v431
    %v433 = vcombine.high %v432, %v432
    %v435 = vunpack.c.l.s4 1966171168
    %v436 = vunpack.c.0.s8 %v435
    %v437 = vlaneseq
    %v438 = vshrl.u32 %v437, 7
    %v439 = vsub.s32 %v436, %v438
    %v440 = vrot.slane %v432, %v439
    %v442 = vunpack.c.l.s4 1966171168
    %v443 = vunpack.c.0.s8 %v442
    %v444 = vlaneseq
    %v445 = vshrl.u32 %v444, 7
    %v446 = vsub.s32 %v443, %v445
    %v447 = vrot.slane %v433, %v446
    %v449 = vsel %vm152, %v447, 0
    %v452 = vsel %vm63, %v291, 0
    %454 = vmatprep.subr.mxu0 0.0
    %455 = vmatpush1.msra.mxu0 %v282
    %456 = vmatprep.subr.mxu0 0.0
    %457 = vmatpush1.msra.mxu0 %v281
    %458 = vmatprep.subr.mxu0 0.0
    %459 = vmatpush1.msra.mxu0 %v280
    %460 = vmatprep.subr.mxu0 0.0
    %461 = vmatpush1.msra.mxu0 %v279
    %462 = vmatprep.subr.mxu0 0.0
    %463 = vmatpush1.msra.mxu0 %v278
    %464 = vmatprep.subr.mxu0 0.0
    %465 = vmatpush1.msra.mxu0 %v277
    %466 = vmatprep.subr.mxu0 0.0
    %467 = vmatpush1.msra.mxu0 %v276
    %468 = vmatprep.subr.mxu0 0.0
    %469 = vmatpush1.msra.mxu0 %v275
    %470 = vmatprep.subr.mxu0 0.0
    %471 = vmatpush1.msra.mxu0 %v274
    %472 = vmatprep.subr.mxu0 0.0
    %473 = vmatpush1.msra.mxu0 %v273
    %474 = vmatprep.subr.mxu0 0.0
    %475 = vmatpush1.msra.mxu0 %v272
    %476 = vmatprep.subr.mxu0 0.0
    %477 = vmatpush1.msra.mxu0 %v271
    %478 = vmatprep.subr.mxu0 0.0
    %479 = vmatpush1.msra.mxu0 %v270
    %480 = vmatprep.subr.mxu0 0.0
    %481 = vmatpush1.msra.mxu0 %v269
    %482 = vmatprep.subr.mxu0 0.0
    %483 = vmatpush1.msra.mxu0 %v268
    %484 = vmatprep.subr.mxu0 0.0
    %485 = vmatpush1.msra.mxu0 %v267
    %486 = vmatprep.subr.mxu0 0.0
    %487 = vmatpush2.msra.mxu0 0.0
    %488 = vmatprep.subr.mxu0 0.0
    %489 = vmatpush2.msra.mxu0 0.0
    %490 = vmatprep.subr.mxu0 0.0
    %491 = vmatpush2.msra.mxu0 0.0
    %492 = vmatprep.subr.mxu0 0.0
    %493 = vmatpush2.msra.mxu0 0.0
    %494 = vmatprep.subr.mxu0 0.0
    %495 = vmatpush2.msra.mxu0 0.0
    %496 = vmatprep.subr.mxu0 0.0
    %497 = vmatpush2.msra.mxu0 0.0
    %498 = vmatprep.subr.mxu0 0.0
    %499 = vmatpush2.msra.mxu0 0.0
    %500 = vmatprep.subr.mxu0 0.0
    %501 = vmatpush2.msra.mxu0 %v452
    %502 = vmatprep.subr.mxu0 0.0
    %503 = vmatpush2.msra.mxu0 %v290
    %504 = vmatprep.subr.mxu0 0.0
    %505 = vmatpush2.msra.mxu0 %v289
    %506 = vmatprep.subr.mxu0 0.0
    %507 = vmatpush2.msra.mxu0 %v288
    %508 = vmatprep.subr.mxu0 0.0
    %509 = vmatpush2.msra.mxu0 %v287
    %510 = vmatprep.subr.mxu0 0.0
    %511 = vmatpush2.msra.mxu0 %v286
    %512 = vmatprep.subr.mxu0 0.0
    %513 = vmatpush2.msra.mxu0 %v285
    %514 = vmatprep.subr.mxu0 0.0
    %515 = vmatpush2.msra.mxu0 %v284
    %516 = vmatprep.subr.mxu0 0.0
    %517 = vmatpush2.msra.mxu0 %v283
    %518 = vmatprep.mubr.f32.mxu0 %v449
    %519 = vmatmul.mubr.f32.gmra.mxu0 %v440
    %v520 = vpop.f32.mrf.mxu0
    %v521 = vadd.f32 %v420, %v520
    %v522 = vpop.f32.mrf.mxu0
    %523 = vdwg.mxu0
    %s524 = scalar_lea.vmem [#allocation2], 2
    %v525 = vld [vmem:[%s524] ss:$8 sm:$0x3]
    %s526 = scalar_lea.vmem [#allocation2], 34
    %v527 = vld [vmem:[%s526] ss:$8 sm:$0x3]
    %s528 = scalar_lea.vmem %s3, 400
    %v529 = vld [vmem:[%s528] sm:$0xff]
    %v530 = vld [vmem:[%s528 + $0x8] sm:$0xff]
    %v531 = vld [vmem:[%s528 + $0x10] sm:$0xff]
    %v532 = vld [vmem:[%s528 + $0x18] sm:$0xff]
    %v533 = vld [vmem:[%s528 + $0x20] sm:$0xff]
    %v534 = vld [vmem:[%s528 + $0x28] sm:$0xff]
    %v535 = vld [vmem:[%s528 + $0x30] sm:$0xff]
    %v536 = vld [vmem:[%s528 + $0x38] sm:$0xff]
    %v537 = vld [vmem:[%s528 + $0x40] sm:$0xff]
    %v538 = vld [vmem:[%s528 + $0x48] sm:$0xff]
    %v539 = vld [vmem:[%s528 + $0x50] sm:$0xff]
    %v540 = vld [vmem:[%s528 + $0x58] sm:$0xff]
    %v541 = vld [vmem:[%s528 + $0x60] sm:$0xff]
    %v542 = vld [vmem:[%s528 + $0x68] sm:$0xff]
    %v543 = vld [vmem:[%s528 + $0x70] sm:$0xff]
    %v544 = vld [vmem:[%s528 + $0x78] sm:$0xff]
    %v545 = vld [vmem:[%s528 + $0x80] sm:$0xff]
    %v546 = vld [vmem:[%s528 + $0x88] sm:$0xff]
    %v547 = vld [vmem:[%s528 + $0x90] sm:$0xff]
    %v548 = vld [vmem:[%s528 + $0x98] sm:$0xff]
    %v549 = vld [vmem:[%s528 + $0xa0] sm:$0xff]
    %v550 = vld [vmem:[%s528 + $0xa8] sm:$0xff]
    %v551 = vld [vmem:[%s528 + $0xb0] sm:$0xff]
    %v552 = vld [vmem:[%s528 + $0xb8] sm:$0xff]
    %v553 = vld [vmem:[%s528 + $0xc0] sm:$0xf]
    %v556 = vcombine.low %v525, %v527
    %v558 = vunpack.c.l.s4 1966171168
    %v559 = vunpack.c.0.s8 %v558
    %v560 = vlaneseq
    %v561 = vshrl.u32 %v560, 7
    %v562 = vsub.s32 %v559, %v561
    %v563 = vrot.slane %v556, %v562
    %v564 = vcombine.high %v563, %v563
    %v566 = vunpack.c.l.s4 1966171168
    %v567 = vunpack.c.0.s8 %v566
    %v568 = vlaneseq
    %v569 = vshrl.u32 %v568, 7
    %v570 = vsub.s32 %v567, %v569
    %v571 = vrot.slane %v563, %v570
    %v573 = vunpack.c.l.s4 1966171168
    %v574 = vunpack.c.0.s8 %v573
    %v575 = vlaneseq
    %v576 = vshrl.u32 %v575, 7
    %v577 = vsub.s32 %v574, %v576
    %v578 = vrot.slane %v564, %v577
    %v580 = vsel %vm152, %v578, 0
    %v583 = vsel %vm63, %v553, 0
    %585 = vmatprep.subr.mxu0 0.0
    %586 = vmatpush1.msra.mxu0 %v544
    %587 = vmatprep.subr.mxu0 0.0
    %588 = vmatpush1.msra.mxu0 %v543
    %589 = vmatprep.subr.mxu0 0.0
    %590 = vmatpush1.msra.mxu0 %v542
    %591 = vmatprep.subr.mxu0 0.0
    %592 = vmatpush1.msra.mxu0 %v541
    %593 = vmatprep.subr.mxu0 0.0
    %594 = vmatpush1.msra.mxu0 %v540
    %595 = vmatprep.subr.mxu0 0.0
    %596 = vmatpush1.msra.mxu0 %v539
    %597 = vmatprep.subr.mxu0 0.0
    %598 = vmatpush1.msra.mxu0 %v538
    %599 = vmatprep.subr.mxu0 0.0
    %600 = vmatpush1.msra.mxu0 %v537
    %601 = vmatprep.subr.mxu0 0.0
    %602 = vmatpush1.msra.mxu0 %v536
    %603 = vmatprep.subr.mxu0 0.0
    %604 = vmatpush1.msra.mxu0 %v535
    %605 = vmatprep.subr.mxu0 0.0
    %606 = vmatpush1.msra.mxu0 %v534
    %607 = vmatprep.subr.mxu0 0.0
    %608 = vmatpush1.msra.mxu0 %v533
    %609 = vmatprep.subr.mxu0 0.0
    %610 = vmatpush1.msra.mxu0 %v532
    %611 = vmatprep.subr.mxu0 0.0
    %612 = vmatpush1.msra.mxu0 %v531
    %613 = vmatprep.subr.mxu0 0.0
    %614 = vmatpush1.msra.mxu0 %v530
    %615 = vmatprep.subr.mxu0 0.0
    %616 = vmatpush1.msra.mxu0 %v529
    %617 = vmatprep.subr.mxu0 0.0
    %618 = vmatpush2.msra.mxu0 0.0
    %619 = vmatprep.subr.mxu0 0.0
    %620 = vmatpush2.msra.mxu0 0.0
    %621 = vmatprep.subr.mxu0 0.0
    %622 = vmatpush2.msra.mxu0 0.0
    %623 = vmatprep.subr.mxu0 0.0
    %624 = vmatpush2.msra.mxu0 0.0
    %625 = vmatprep.subr.mxu0 0.0
    %626 = vmatpush2.msra.mxu0 0.0
    %627 = vmatprep.subr.mxu0 0.0
    %628 = vmatpush2.msra.mxu0 0.0
    %629 = vmatprep.subr.mxu0 0.0
    %630 = vmatpush2.msra.mxu0 0.0
    %631 = vmatprep.subr.mxu0 0.0
    %632 = vmatpush2.msra.mxu0 %v583
    %633 = vmatprep.subr.mxu0 0.0
    %634 = vmatpush2.msra.mxu0 %v552
    %635 = vmatprep.subr.mxu0 0.0
    %636 = vmatpush2.msra.mxu0 %v551
    %637 = vmatprep.subr.mxu0 0.0
    %638 = vmatpush2.msra.mxu0 %v550
    %639 = vmatprep.subr.mxu0 0.0
    %640 = vmatpush2.msra.mxu0 %v549
    %641 = vmatprep.subr.mxu0 0.0
    %642 = vmatpush2.msra.mxu0 %v548
    %643 = vmatprep.subr.mxu0 0.0
    %644 = vmatpush2.msra.mxu0 %v547
    %645 = vmatprep.subr.mxu0 0.0
    %646 = vmatpush2.msra.mxu0 %v546
    %647 = vmatprep.subr.mxu0 0.0
    %648 = vmatpush2.msra.mxu0 %v545
    %649 = vmatprep.mubr.f32.mxu0 %v580
    %650 = vmatmul.mubr.f32.gmra.mxu0 %v571
    %v651 = vpop.f32.mrf.mxu0
    %v652 = vadd.f32 0.0, %v651
    %v653 = vpop.f32.mrf.mxu0
    %654 = vdwg.mxu0
    %v655 = vadd.f32 %v521, %v652
    %s656 = scalar_lea.vmem [#allocation2], 3
    %v657 = vld [vmem:[%s656] ss:$8 sm:$0x3]
    %s658 = scalar_lea.vmem [#allocation2], 35
    %v659 = vld [vmem:[%s658] ss:$8 sm:$0x3]
    %s660 = scalar_lea.vmem %s3, 600
    %v661 = vld [vmem:[%s660] sm:$0xff]
    %v662 = vld [vmem:[%s660 + $0x8] sm:$0xff]
    %v663 = vld [vmem:[%s660 + $0x10] sm:$0xff]
    %v664 = vld [vmem:[%s660 + $0x18] sm:$0xff]
    %v665 = vld [vmem:[%s660 + $0x20] sm:$0xff]
    %v666 = vld [vmem:[%s660 + $0x28] sm:$0xff]
    %v667 = vld [vmem:[%s660 + $0x30] sm:$0xff]
    %v668 = vld [vmem:[%s660 + $0x38] sm:$0xff]
    %v669 = vld [vmem:[%s660 + $0x40] sm:$0xff]
    %v670 = vld [vmem:[%s660 + $0x48] sm:$0xff]
    %v671 = vld [vmem:[%s660 + $0x50] sm:$0xff]
    %v672 = vld [vmem:[%s660 + $0x58] sm:$0xff]
    %v673 = vld [vmem:[%s660 + $0x60] sm:$0xff]
    %v674 = vld [vmem:[%s660 + $0x68] sm:$0xff]
    %v675 = vld [vmem:[%s660 + $0x70] sm:$0xff]
    %v676 = vld [vmem:[%s660 + $0x78] sm:$0xff]
    %v677 = vld [vmem:[%s660 + $0x80] sm:$0xff]
    %v678 = vld [vmem:[%s660 + $0x88] sm:$0xff]
    %v679 = vld [vmem:[%s660 + $0x90] sm:$0xff]
    %v680 = vld [vmem:[%s660 + $0x98] sm:$0xff]
    %v681 = vld [vmem:[%s660 + $0xa0] sm:$0xff]
    %v682 = vld [vmem:[%s660 + $0xa8] sm:$0xff]
    %v683 = vld [vmem:[%s660 + $0xb0] sm:$0xff]
    %v684 = vld [vmem:[%s660 + $0xb8] sm:$0xff]
    %v685 = vld [vmem:[%s660 + $0xc0] sm:$0xf]
    %v688 = vcombine.low %v657, %v659
    %v690 = vunpack.c.l.s4 1966171168
    %v691 = vunpack.c.0.s8 %v690
    %v692 = vlaneseq
    %v693 = vshrl.u32 %v692, 7
    %v694 = vsub.s32 %v691, %v693
    %v695 = vrot.slane %v688, %v694
    %v696 = vcombine.high %v695, %v695
    %v698 = vunpack.c.l.s4 1966171168
    %v699 = vunpack.c.0.s8 %v698
    %v700 = vlaneseq
    %v701 = vshrl.u32 %v700, 7
    %v702 = vsub.s32 %v699, %v701
    %v703 = vrot.slane %v695, %v702
    %v705 = vunpack.c.l.s4 1966171168
    %v706 = vunpack.c.0.s8 %v705
    %v707 = vlaneseq
    %v708 = vshrl.u32 %v707, 7
    %v709 = vsub.s32 %v706, %v708
    %v710 = vrot.slane %v696, %v709
    %v712 = vsel %vm152, %v710, 0
    %v715 = vsel %vm63, %v685, 0
    %717 = vmatprep.subr.mxu0 0.0
    %718 = vmatpush1.msra.mxu0 %v676
    %719 = vmatprep.subr.mxu0 0.0
    %720 = vmatpush1.msra.mxu0 %v675
    %721 = vmatprep.subr.mxu0 0.0
    %722 = vmatpush1.msra.mxu0 %v674
    %723 = vmatprep.subr.mxu0 0.0
    %724 = vmatpush1.msra.mxu0 %v673
    %725 = vmatprep.subr.mxu0 0.0
    %726 = vmatpush1.msra.mxu0 %v672
    %727 = vmatprep.subr.mxu0 0.0
    %728 = vmatpush1.msra.mxu0 %v671
    %729 = vmatprep.subr.mxu0 0.0
    %730 = vmatpush1.msra.mxu0 %v670
    %731 = vmatprep.subr.mxu0 0.0
    %732 = vmatpush1.msra.mxu0 %v669
    %733 = vmatprep.subr.mxu0 0.0
    %734 = vmatpush1.msra.mxu0 %v668
    %735 = vmatprep.subr.mxu0 0.0
    %736 = vmatpush1.msra.mxu0 %v667
    %737 = vmatprep.subr.mxu0 0.0
    %738 = vmatpush1.msra.mxu0 %v666
    %739 = vmatprep.subr.mxu0 0.0
    %740 = vmatpush1.msra.mxu0 %v665
    %741 = vmatprep.subr.mxu0 0.0
    %742 = vmatpush1.msra.mxu0 %v664
    %743 = vmatprep.subr.mxu0 0.0
    %744 = vmatpush1.msra.mxu0 %v663
    %745 = vmatprep.subr.mxu0 0.0
    %746 = vmatpush1.msra.mxu0 %v662
    %747 = vmatprep.subr.mxu0 0.0
    %748 = vmatpush1.msra.mxu0 %v661
    %749 = vmatprep.subr.mxu0 0.0
    %750 = vmatpush2.msra.mxu0 0.0
    %751 = vmatprep.subr.mxu0 0.0
    %752 = vmatpush2.msra.mxu0 0.0
    %753 = vmatprep.subr.mxu0 0.0
    %754 = vmatpush2.msra.mxu0 0.0
    %755 = vmatprep.subr.mxu0 0.0
    %756 = vmatpush2.msra.mxu0 0.0
    %757 = vmatprep.subr.mxu0 0.0
    %758 = vmatpush2.msra.mxu0 0.0
    %759 = vmatprep.subr.mxu0 0.0
    %760 = vmatpush2.msra.mxu0 0.0
    %761 = vmatprep.subr.mxu0 0.0
    %762 = vmatpush2.msra.mxu0 0.0
    %763 = vmatprep.subr.mxu0 0.0
    %764 = vmatpush2.msra.mxu0 %v715
    %765 = vmatprep.subr.mxu0 0.0
    %766 = vmatpush2.msra.mxu0 %v684
    %767 = vmatprep.subr.mxu0 0.0
    %768 = vmatpush2.msra.mxu0 %v683
    %769 = vmatprep.subr.mxu0 0.0
    %770 = vmatpush2.msra.mxu0 %v682
    %771 = vmatprep.subr.mxu0 0.0
    %772 = vmatpush2.msra.mxu0 %v681
    %773 = vmatprep.subr.mxu0 0.0
    %774 = vmatpush2.msra.mxu0 %v680
    %775 = vmatprep.subr.mxu0 0.0
    %776 = vmatpush2.msra.mxu0 %v679
    %777 = vmatprep.subr.mxu0 0.0
    %778 = vmatpush2.msra.mxu0 %v678
    %779 = vmatprep.subr.mxu0 0.0
    %780 = vmatpush2.msra.mxu0 %v677
    %781 = vmatprep.mubr.f32.mxu0 %v712
    %782 = vmatmul.mubr.f32.gmra.mxu0 %v703
    %v783 = vpop.f32.mrf.mxu0
    %v784 = vadd.f32 0.0, %v783
    %v785 = vpop.f32.mrf.mxu0
    %786 = vdwg.mxu0
    %v787 = vadd.f32 %v655, %v784
    %s788 = scalar_lea.vmem [#allocation2], 4
    %v789 = vld [vmem:[%s788] ss:$8 sm:$0x3]
    %s790 = scalar_lea.vmem [#allocation2], 36
    %v791 = vld [vmem:[%s790] ss:$8 sm:$0x3]
    %s792 = scalar_lea.vmem %s3, 800
    %v793 = vld [vmem:[%s792] sm:$0xff]
    %v794 = vld [vmem:[%s792 + $0x8] sm:$0xff]
    %v795 = vld [vmem:[%s792 + $0x10] sm:$0xff]
    %v796 = vld [vmem:[%s792 + $0x18] sm:$0xff]
    %v797 = vld [vmem:[%s792 + $0x20] sm:$0xff]
    %v798 = vld [vmem:[%s792 + $0x28] sm:$0xff]
    %v799 = vld [vmem:[%s792 + $0x30] sm:$0xff]
    %v800 = vld [vmem:[%s792 + $0x38] sm:$0xff]
    %v801 = vld [vmem:[%s792 + $0x40] sm:$0xff]
    %v802 = vld [vmem:[%s792 + $0x48] sm:$0xff]
    %v803 = vld [vmem:[%s792 + $0x50] sm:$0xff]
    %v804 = vld [vmem:[%s792 + $0x58] sm:$0xff]
    %v805 = vld [vmem:[%s792 + $0x60] sm:$0xff]
    %v806 = vld [vmem:[%s792 + $0x68] sm:$0xff]
    %v807 = vld [vmem:[%s792 + $0x70] sm:$0xff]
    %v808 = vld [vmem:[%s792 + $0x78] sm:$0xff]
    %v809 = vld [vmem:[%s792 + $0x80] sm:$0xff]
    %v810 = vld [vmem:[%s792 + $0x88] sm:$0xff]
    %v811 = vld [vmem:[%s792 + $0x90] sm:$0xff]
    %v812 = vld [vmem:[%s792 + $0x98] sm:$0xff]
    %v813 = vld [vmem:[%s792 + $0xa0] sm:$0xff]
    %v814 = vld [vmem:[%s792 + $0xa8] sm:$0xff]
    %v815 = vld [vmem:[%s792 + $0xb0] sm:$0xff]
    %v816 = vld [vmem:[%s792 + $0xb8] sm:$0xff]
    %v817 = vld [vmem:[%s792 + $0xc0] sm:$0xf]
    %v820 = vcombine.low %v789, %v791
    %v822 = vunpack.c.l.s4 1966171168
    %v823 = vunpack.c.0.s8 %v822
    %v824 = vlaneseq
    %v825 = vshrl.u32 %v824, 7
    %v826 = vsub.s32 %v823, %v825
    %v827 = vrot.slane %v820, %v826
    %v828 = vcombine.high %v827, %v827
    %v830 = vunpack.c.l.s4 1966171168
    %v831 = vunpack.c.0.s8 %v830
    %v832 = vlaneseq
    %v833 = vshrl.u32 %v832, 7
    %v834 = vsub.s32 %v831, %v833
    %v835 = vrot.slane %v827, %v834
    %v837 = vunpack.c.l.s4 1966171168
    %v838 = vunpack.c.0.s8 %v837
    %v839 = vlaneseq
    %v840 = vshrl.u32 %v839, 7
    %v841 = vsub.s32 %v838, %v840
    %v842 = vrot.slane %v828, %v841
    %v844 = vsel %vm152, %v842, 0
    %v847 = vsel %vm63, %v817, 0
    %849 = vmatprep.subr.mxu0 0.0
    %850 = vmatpush1.msra.mxu0 %v808
    %851 = vmatprep.subr.mxu0 0.0
    %852 = vmatpush1.msra.mxu0 %v807
    %853 = vmatprep.subr.mxu0 0.0
    %854 = vmatpush1.msra.mxu0 %v806
    %855 = vmatprep.subr.mxu0 0.0
    %856 = vmatpush1.msra.mxu0 %v805
    %857 = vmatprep.subr.mxu0 0.0
    %858 = vmatpush1.msra.mxu0 %v804
    %859 = vmatprep.subr.mxu0 0.0
    %860 = vmatpush1.msra.mxu0 %v803
    %861 = vmatprep.subr.mxu0 0.0
    %862 = vmatpush1.msra.mxu0 %v802
    %863 = vmatprep.subr.mxu0 0.0
    %864 = vmatpush1.msra.mxu0 %v801
    %865 = vmatprep.subr.mxu0 0.0
    %866 = vmatpush1.msra.mxu0 %v800
    %867 = vmatprep.subr.mxu0 0.0
    %868 = vmatpush1.msra.mxu0 %v799
    %869 = vmatprep.subr.mxu0 0.0
    %870 = vmatpush1.msra.mxu0 %v798
    %871 = vmatprep.subr.mxu0 0.0
    %872 = vmatpush1.msra.mxu0 %v797
    %873 = vmatprep.subr.mxu0 0.0
    %874 = vmatpush1.msra.mxu0 %v796
    %875 = vmatprep.subr.mxu0 0.0
    %876 = vmatpush1.msra.mxu0 %v795
    %877 = vmatprep.subr.mxu0 0.0
    %878 = vmatpush1.msra.mxu0 %v794
    %879 = vmatprep.subr.mxu0 0.0
    %880 = vmatpush1.msra.mxu0 %v793
    %881 = vmatprep.subr.mxu0 0.0
    %882 = vmatpush2.msra.mxu0 0.0
    %883 = vmatprep.subr.mxu0 0.0
    %884 = vmatpush2.msra.mxu0 0.0
    %885 = vmatprep.subr.mxu0 0.0
    %886 = vmatpush2.msra.mxu0 0.0
    %887 = vmatprep.subr.mxu0 0.0
    %888 = vmatpush2.msra.mxu0 0.0
    %889 = vmatprep.subr.mxu0 0.0
    %890 = vmatpush2.msra.mxu0 0.0
    %891 = vmatprep.subr.mxu0 0.0
    %892 = vmatpush2.msra.mxu0 0.0
    %893 = vmatprep.subr.mxu0 0.0
    %894 = vmatpush2.msra.mxu0 0.0
    %895 = vmatprep.subr.mxu0 0.0
    %896 = vmatpush2.msra.mxu0 %v847
    %897 = vmatprep.subr.mxu0 0.0
    %898 = vmatpush2.msra.mxu0 %v816
    %899 = vmatprep.subr.mxu0 0.0
    %900 = vmatpush2.msra.mxu0 %v815
    %901 = vmatprep.subr.mxu0 0.0
    %902 = vmatpush2.msra.mxu0 %v814
    %903 = vmatprep.subr.mxu0 0.0
    %904 = vmatpush2.msra.mxu0 %v813
    %905 = vmatprep.subr.mxu0 0.0
    %906 = vmatpush2.msra.mxu0 %v812
    %907 = vmatprep.subr.mxu0 0.0
    %908 = vmatpush2.msra.mxu0 %v811
    %909 = vmatprep.subr.mxu0 0.0
    %910 = vmatpush2.msra.mxu0 %v810
    %911 = vmatprep.subr.mxu0 0.0
    %912 = vmatpush2.msra.mxu0 %v809
    %913 = vmatprep.mubr.f32.mxu0 %v844
    %914 = vmatmul.mubr.f32.gmra.mxu0 %v835
    %v915 = vpop.f32.mrf.mxu0
    %v916 = vadd.f32 0.0, %v915
    %v917 = vpop.f32.mrf.mxu0
    %918 = vdwg.mxu0
    %v919 = vadd.f32 %v787, %v916
    %s920 = scalar_lea.vmem [#allocation2], 5
    %v921 = vld [vmem:[%s920] ss:$8 sm:$0x3]
    %s922 = scalar_lea.vmem [#allocation2], 37
    %v923 = vld [vmem:[%s922] ss:$8 sm:$0x3]
    %s924 = scalar_lea.vmem %s3, 1000
    %v925 = vld [vmem:[%s924] sm:$0xff]
    %v926 = vld [vmem:[%s924 + $0x8] sm:$0xff]
    %v927 = vld [vmem:[%s924 + $0x10] sm:$0xff]
    %v928 = vld [vmem:[%s924 + $0x18] sm:$0xff]
    %v929 = vld [vmem:[%s924 + $0x20] sm:$0xff]
    %v930 = vld [vmem:[%s924 + $0x28] sm:$0xff]
    %v931 = vld [vmem:[%s924 + $0x30] sm:$0xff]
    %v932 = vld [vmem:[%s924 + $0x38] sm:$0xff]
    %v933 = vld [vmem:[%s924 + $0x40] sm:$0xff]
    %v934 = vld [vmem:[%s924 + $0x48] sm:$0xff]
    %v935 = vld [vmem:[%s924 + $0x50] sm:$0xff]
    %v936 = vld [vmem:[%s924 + $0x58] sm:$0xff]
    %v937 = vld [vmem:[%s924 + $0x60] sm:$0xff]
    %v938 = vld [vmem:[%s924 + $0x68] sm:$0xff]
    %v939 = vld [vmem:[%s924 + $0x70] sm:$0xff]
    %v940 = vld [vmem:[%s924 + $0x78] sm:$0xff]
    %v941 = vld [vmem:[%s924 + $0x80] sm:$0xff]
    %v942 = vld [vmem:[%s924 + $0x88] sm:$0xff]
    %v943 = vld [vmem:[%s924 + $0x90] sm:$0xff]
    %v944 = vld [vmem:[%s924 + $0x98] sm:$0xff]
    %v945 = vld [vmem:[%s924 + $0xa0] sm:$0xff]
    %v946 = vld [vmem:[%s924 + $0xa8] sm:$0xff]
    %v947 = vld [vmem:[%s924 + $0xb0] sm:$0xff]
    %v948 = vld [vmem:[%s924 + $0xb8] sm:$0xff]
    %v949 = vld [vmem:[%s924 + $0xc0] sm:$0xf]
    %v952 = vcombine.low %v921, %v923
    %v954 = vunpack.c.l.s4 1966171168
    %v955 = vunpack.c.0.s8 %v954
    %v956 = vlaneseq
    %v957 = vshrl.u32 %v956, 7
    %v958 = vsub.s32 %v955, %v957
    %v959 = vrot.slane %v952, %v958
    %v960 = vcombine.high %v959, %v959
    %v962 = vunpack.c.l.s4 1966171168
    %v963 = vunpack.c.0.s8 %v962
    %v964 = vlaneseq
    %v965 = vshrl.u32 %v964, 7
    %v966 = vsub.s32 %v963, %v965
    %v967 = vrot.slane %v959, %v966
    %v969 = vunpack.c.l.s4 1966171168
    %v970 = vunpack.c.0.s8 %v969
    %v971 = vlaneseq
    %v972 = vshrl.u32 %v971, 7
    %v973 = vsub.s32 %v970, %v972
    %v974 = vrot.slane %v960, %v973
    %v976 = vsel %vm152, %v974, 0
    %v979 = vsel %vm63, %v949, 0
    %981 = vmatprep.subr.mxu0 0.0
    %982 = vmatpush1.msra.mxu0 %v940
    %983 = vmatprep.subr.mxu0 0.0
    %984 = vmatpush1.msra.mxu0 %v939
    %985 = vmatprep.subr.mxu0 0.0
    %986 = vmatpush1.msra.mxu0 %v938
    %987 = vmatprep.subr.mxu0 0.0
    %988 = vmatpush1.msra.mxu0 %v937
    %989 = vmatprep.subr.mxu0 0.0
    %990 = vmatpush1.msra.mxu0 %v936
    %991 = vmatprep.subr.mxu0 0.0
    %992 = vmatpush1.msra.mxu0 %v935
    %993 = vmatprep.subr.mxu0 0.0
    %994 = vmatpush1.msra.mxu0 %v934
    %995 = vmatprep.subr.mxu0 0.0
    %996 = vmatpush1.msra.mxu0 %v933
    %997 = vmatprep.subr.mxu0 0.0
    %998 = vmatpush1.msra.mxu0 %v932
    %999 = vmatprep.subr.mxu0 0.0
    %1000 = vmatpush1.msra.mxu0 %v931
    %1001 = vmatprep.subr.mxu0 0.0
    %1002 = vmatpush1.msra.mxu0 %v930
    %1003 = vmatprep.subr.mxu0 0.0
    %1004 = vmatpush1.msra.mxu0 %v929
    %1005 = vmatprep.subr.mxu0 0.0
    %1006 = vmatpush1.msra.mxu0 %v928
    %1007 = vmatprep.subr.mxu0 0.0
    %1008 = vmatpush1.msra.mxu0 %v927
    %1009 = vmatprep.subr.mxu0 0.0
    %1010 = vmatpush1.msra.mxu0 %v926
    %1011 = vmatprep.subr.mxu0 0.0
    %1012 = vmatpush1.msra.mxu0 %v925
    %1013 = vmatprep.subr.mxu0 0.0
    %1014 = vmatpush2.msra.mxu0 0.0
    %1015 = vmatprep.subr.mxu0 0.0
    %1016 = vmatpush2.msra.mxu0 0.0
    %1017 = vmatprep.subr.mxu0 0.0
    %1018 = vmatpush2.msra.mxu0 0.0
    %1019 = vmatprep.subr.mxu0 0.0
    %1020 = vmatpush2.msra.mxu0 0.0
    %1021 = vmatprep.subr.mxu0 0.0
    %1022 = vmatpush2.msra.mxu0 0.0
    %1023 = vmatprep.subr.mxu0 0.0
    %1024 = vmatpush2.msra.mxu0 0.0
    %1025 = vmatprep.subr.mxu0 0.0
    %1026 = vmatpush2.msra.mxu0 0.0
    %1027 = vmatprep.subr.mxu0 0.0
    %1028 = vmatpush2.msra.mxu0 %v979
    %1029 = vmatprep.subr.mxu0 0.0
    %1030 = vmatpush2.msra.mxu0 %v948
    %1031 = vmatprep.subr.mxu0 0.0
    %1032 = vmatpush2.msra.mxu0 %v947
    %1033 = vmatprep.subr.mxu0 0.0
    %1034 = vmatpush2.msra.mxu0 %v946
    %1035 = vmatprep.subr.mxu0 0.0
    %1036 = vmatpush2.msra.mxu0 %v945
    %1037 = vmatprep.subr.mxu0 0.0
    %1038 = vmatpush2.msra.mxu0 %v944
    %1039 = vmatprep.subr.mxu0 0.0
    %1040 = vmatpush2.msra.mxu0 %v943
    %1041 = vmatprep.subr.mxu0 0.0
    %1042 = vmatpush2.msra.mxu0 %v942
    %1043 = vmatprep.subr.mxu0 0.0
    %1044 = vmatpush2.msra.mxu0 %v941
    %1045 = vmatprep.mubr.f32.mxu0 %v976
    %1046 = vmatmul.mubr.f32.gmra.mxu0 %v967
    %v1047 = vpop.f32.mrf.mxu0
    %v1048 = vadd.f32 0.0, %v1047
    %v1049 = vpop.f32.mrf.mxu0
    %1050 = vdwg.mxu0
    %v1051 = vadd.f32 %v919, %v1048
    %s1052 = scalar_lea.vmem [#allocation2], 6
    %v1053 = vld [vmem:[%s1052] ss:$8 sm:$0x3]
    %s1054 = scalar_lea.vmem [#allocation2], 38
    %v1055 = vld [vmem:[%s1054] ss:$8 sm:$0x3]
    %s1056 = scalar_lea.vmem %s3, 1200
    %v1057 = vld [vmem:[%s1056] sm:$0xff]
    %v1058 = vld [vmem:[%s1056 + $0x8] sm:$0xff]
    %v1059 = vld [vmem:[%s1056 + $0x10] sm:$0xff]
    %v1060 = vld [vmem:[%s1056 + $0x18] sm:$0xff]
    %v1061 = vld [vmem:[%s1056 + $0x20] sm:$0xff]
    %v1062 = vld [vmem:[%s1056 + $0x28] sm:$0xff]
    %v1063 = vld [vmem:[%s1056 + $0x30] sm:$0xff]
    %v1064 = vld [vmem:[%s1056 + $0x38] sm:$0xff]
    %v1065 = vld [vmem:[%s1056 + $0x40] sm:$0xff]
    %v1066 = vld [vmem:[%s1056 + $0x48] sm:$0xff]
    %v1067 = vld [vmem:[%s1056 + $0x50] sm:$0xff]
    %v1068 = vld [vmem:[%s1056 + $0x58] sm:$0xff]
    %v1069 = vld [vmem:[%s1056 + $0x60] sm:$0xff]
    %v1070 = vld [vmem:[%s1056 + $0x68] sm:$0xff]
    %v1071 = vld [vmem:[%s1056 + $0x70] sm:$0xff]
    %v1072 = vld [vmem:[%s1056 + $0x78] sm:$0xff]
    %v1073 = vld [vmem:[%s1056 + $0x80] sm:$0xff]
    %v1074 = vld [vmem:[%s1056 + $0x88] sm:$0xff]
    %v1075 = vld [vmem:[%s1056 + $0x90] sm:$0xff]
    %v1076 = vld [vmem:[%s1056 + $0x98] sm:$0xff]
    %v1077 = vld [vmem:[%s1056 + $0xa0] sm:$0xff]
    %v1078 = vld [vmem:[%s1056 + $0xa8] sm:$0xff]
    %v1079 = vld [vmem:[%s1056 + $0xb0] sm:$0xff]
    %v1080 = vld [vmem:[%s1056 + $0xb8] sm:$0xff]
    %v1081 = vld [vmem:[%s1056 + $0xc0] sm:$0xf]
    %v1084 = vcombine.low %v1053, %v1055
    %v1086 = vunpack.c.l.s4 1966171168
    %v1087 = vunpack.c.0.s8 %v1086
    %v1088 = vlaneseq
    %v1089 = vshrl.u32 %v1088, 7
    %v1090 = vsub.s32 %v1087, %v1089
    %v1091 = vrot.slane %v1084, %v1090
    %v1092 = vcombine.high %v1091, %v1091
    %v1094 = vunpack.c.l.s4 1966171168
    %v1095 = vunpack.c.0.s8 %v1094
    %v1096 = vlaneseq
    %v1097 = vshrl.u32 %v1096, 7
    %v1098 = vsub.s32 %v1095, %v1097
    %v1099 = vrot.slane %v1091, %v1098
    %v1101 = vunpack.c.l.s4 1966171168
    %v1102 = vunpack.c.0.s8 %v1101
    %v1103 = vlaneseq
    %v1104 = vshrl.u32 %v1103, 7
    %v1105 = vsub.s32 %v1102, %v1104
    %v1106 = vrot.slane %v1092, %v1105
    %v1108 = vsel %vm152, %v1106, 0
    %v1111 = vsel %vm63, %v1081, 0
    %1113 = vmatprep.subr.mxu0 0.0
    %1114 = vmatpush1.msra.mxu0 %v1072
    %1115 = vmatprep.subr.mxu0 0.0
    %1116 = vmatpush1.msra.mxu0 %v1071
    %1117 = vmatprep.subr.mxu0 0.0
    %1118 = vmatpush1.msra.mxu0 %v1070
    %1119 = vmatprep.subr.mxu0 0.0
    %1120 = vmatpush1.msra.mxu0 %v1069
    %1121 = vmatprep.subr.mxu0 0.0
    %1122 = vmatpush1.msra.mxu0 %v1068
    %1123 = vmatprep.subr.mxu0 0.0
    %1124 = vmatpush1.msra.mxu0 %v1067
    %1125 = vmatprep.subr.mxu0 0.0
    %1126 = vmatpush1.msra.mxu0 %v1066
    %1127 = vmatprep.subr.mxu0 0.0
    %1128 = vmatpush1.msra.mxu0 %v1065
    %1129 = vmatprep.subr.mxu0 0.0
    %1130 = vmatpush1.msra.mxu0 %v1064
    %1131 = vmatprep.subr.mxu0 0.0
    %1132 = vmatpush1.msra.mxu0 %v1063
    %1133 = vmatprep.subr.mxu0 0.0
    %1134 = vmatpush1.msra.mxu0 %v1062
    %1135 = vmatprep.subr.mxu0 0.0
    %1136 = vmatpush1.msra.mxu0 %v1061
    %1137 = vmatprep.subr.mxu0 0.0
    %1138 = vmatpush1.msra.mxu0 %v1060
    %1139 = vmatprep.subr.mxu0 0.0
    %1140 = vmatpush1.msra.mxu0 %v1059
    %1141 = vmatprep.subr.mxu0 0.0
    %1142 = vmatpush1.msra.mxu0 %v1058
    %1143 = vmatprep.subr.mxu0 0.0
    %1144 = vmatpush1.msra.mxu0 %v1057
    %1145 = vmatprep.subr.mxu0 0.0
    %1146 = vmatpush2.msra.mxu0 0.0
    %1147 = vmatprep.subr.mxu0 0.0
    %1148 = vmatpush2.msra.mxu0 0.0
    %1149 = vmatprep.subr.mxu0 0.0
    %1150 = vmatpush2.msra.mxu0 0.0
    %1151 = vmatprep.subr.mxu0 0.0
    %1152 = vmatpush2.msra.mxu0 0.0
    %1153 = vmatprep.subr.mxu0 0.0
    %1154 = vmatpush2.msra.mxu0 0.0
    %1155 = vmatprep.subr.mxu0 0.0
    %1156 = vmatpush2.msra.mxu0 0.0
    %1157 = vmatprep.subr.mxu0 0.0
    %1158 = vmatpush2.msra.mxu0 0.0
    %1159 = vmatprep.subr.mxu0 0.0
    %1160 = vmatpush2.msra.mxu0 %v1111
    %1161 = vmatprep.subr.mxu0 0.0
    %1162 = vmatpush2.msra.mxu0 %v1080
    %1163 = vmatprep.subr.mxu0 0.0
    %1164 = vmatpush2.msra.mxu0 %v1079
    %1165 = vmatprep.subr.mxu0 0.0
    %1166 = vmatpush2.msra.mxu0 %v1078
    %1167 = vmatprep.subr.mxu0 0.0
    %1168 = vmatpush2.msra.mxu0 %v1077
    %1169 = vmatprep.subr.mxu0 0.0
    %1170 = vmatpush2.msra.mxu0 %v1076
    %1171 = vmatprep.subr.mxu0 0.0
    %1172 = vmatpush2.msra.mxu0 %v1075
    %1173 = vmatprep.subr.mxu0 0.0
    %1174 = vmatpush2.msra.mxu0 %v1074
    %1175 = vmatprep.subr.mxu0 0.0
    %1176 = vmatpush2.msra.mxu0 %v1073
    %1177 = vmatprep.mubr.f32.mxu0 %v1108
    %1178 = vmatmul.mubr.f32.gmra.mxu0 %v1099
    %v1179 = vpop.f32.mrf.mxu0
    %v1180 = vadd.f32 0.0, %v1179
    %v1181 = vpop.f32.mrf.mxu0
    %1182 = vdwg.mxu0
    %v1183 = vadd.f32 %v1051, %v1180
    %s1184 = scalar_lea.vmem [#allocation2], 7
    %v1185 = vld [vmem:[%s1184] ss:$8 sm:$0x3]
    %s1186 = scalar_lea.vmem [#allocation2], 39
    %v1187 = vld [vmem:[%s1186] ss:$8 sm:$0x3]
    %s1188 = scalar_lea.vmem %s3, 1400
    %v1189 = vld [vmem:[%s1188] sm:$0xff]
    %v1190 = vld [vmem:[%s1188 + $0x8] sm:$0xff]
    %v1191 = vld [vmem:[%s1188 + $0x10] sm:$0xff]
    %v1192 = vld [vmem:[%s1188 + $0x18] sm:$0xff]
    %v1193 = vld [vmem:[%s1188 + $0x20] sm:$0xff]
    %v1194 = vld [vmem:[%s1188 + $0x28] sm:$0xff]
    %v1195 = vld [vmem:[%s1188 + $0x30] sm:$0xff]
    %v1196 = vld [vmem:[%s1188 + $0x38] sm:$0xff]
    %v1197 = vld [vmem:[%s1188 + $0x40] sm:$0xff]
    %v1198 = vld [vmem:[%s1188 + $0x48] sm:$0xff]
    %v1199 = vld [vmem:[%s1188 + $0x50] sm:$0xff]
    %v1200 = vld [vmem:[%s1188 + $0x58] sm:$0xff]
    %v1201 = vld [vmem:[%s1188 + $0x60] sm:$0xff]
    %v1202 = vld [vmem:[%s1188 + $0x68] sm:$0xff]
    %v1203 = vld [vmem:[%s1188 + $0x70] sm:$0xff]
    %v1204 = vld [vmem:[%s1188 + $0x78] sm:$0xff]
    %v1205 = vld [vmem:[%s1188 + $0x80] sm:$0xff]
    %v1206 = vld [vmem:[%s1188 + $0x88] sm:$0xff]
    %v1207 = vld [vmem:[%s1188 + $0x90] sm:$0xff]
    %v1208 = vld [vmem:[%s1188 + $0x98] sm:$0xff]
    %v1209 = vld [vmem:[%s1188 + $0xa0] sm:$0xff]
    %v1210 = vld [vmem:[%s1188 + $0xa8] sm:$0xff]
    %v1211 = vld [vmem:[%s1188 + $0xb0] sm:$0xff]
    %v1212 = vld [vmem:[%s1188 + $0xb8] sm:$0xff]
    %v1213 = vld [vmem:[%s1188 + $0xc0] sm:$0xf]
    %v1216 = vcombine.low %v1185, %v1187
    %v1218 = vunpack.c.l.s4 1966171168
    %v1219 = vunpack.c.0.s8 %v1218
    %v1220 = vlaneseq
    %v1221 = vshrl.u32 %v1220, 7
    %v1222 = vsub.s32 %v1219, %v1221
    %v1223 = vrot.slane %v1216, %v1222
    %v1224 = vcombine.high %v1223, %v1223
    %v1226 = vunpack.c.l.s4 1966171168
    %v1227 = vunpack.c.0.s8 %v1226
    %v1228 = vlaneseq
    %v1229 = vshrl.u32 %v1228, 7
    %v1230 = vsub.s32 %v1227, %v1229
    %v1231 = vrot.slane %v1223, %v1230
    %v1233 = vunpack.c.l.s4 1966171168
    %v1234 = vunpack.c.0.s8 %v1233
    %v1235 = vlaneseq
    %v1236 = vshrl.u32 %v1235, 7
    %v1237 = vsub.s32 %v1234, %v1236
    %v1238 = vrot.slane %v1224, %v1237
    %v1240 = vsel %vm152, %v1238, 0
    %v1243 = vsel %vm63, %v1213, 0
    %1245 = vmatprep.subr.mxu0 0.0
    %1246 = vmatpush1.msra.mxu0 %v1204
    %1247 = vmatprep.subr.mxu0 0.0
    %1248 = vmatpush1.msra.mxu0 %v1203
    %1249 = vmatprep.subr.mxu0 0.0
    %1250 = vmatpush1.msra.mxu0 %v1202
    %1251 = vmatprep.subr.mxu0 0.0
    %1252 = vmatpush1.msra.mxu0 %v1201
    %1253 = vmatprep.subr.mxu0 0.0
    %1254 = vmatpush1.msra.mxu0 %v1200
    %1255 = vmatprep.subr.mxu0 0.0
    %1256 = vmatpush1.msra.mxu0 %v1199
    %1257 = vmatprep.subr.mxu0 0.0
    %1258 = vmatpush1.msra.mxu0 %v1198
    %1259 = vmatprep.subr.mxu0 0.0
    %1260 = vmatpush1.msra.mxu0 %v1197
    %1261 = vmatprep.subr.mxu0 0.0
    %1262 = vmatpush1.msra.mxu0 %v1196
    %1263 = vmatprep.subr.mxu0 0.0
    %1264 = vmatpush1.msra.mxu0 %v1195
    %1265 = vmatprep.subr.mxu0 0.0
    %1266 = vmatpush1.msra.mxu0 %v1194
    %1267 = vmatprep.subr.mxu0 0.0
    %1268 = vmatpush1.msra.mxu0 %v1193
    %1269 = vmatprep.subr.mxu0 0.0
    %1270 = vmatpush1.msra.mxu0 %v1192
    %1271 = vmatprep.subr.mxu0 0.0
    %1272 = vmatpush1.msra.mxu0 %v1191
    %1273 = vmatprep.subr.mxu0 0.0
    %1274 = vmatpush1.msra.mxu0 %v1190
    %1275 = vmatprep.subr.mxu0 0.0
    %1276 = vmatpush1.msra.mxu0 %v1189
    %1277 = vmatprep.subr.mxu0 0.0
    %1278 = vmatpush2.msra.mxu0 0.0
    %1279 = vmatprep.subr.mxu0 0.0
    %1280 = vmatpush2.msra.mxu0 0.0
    %1281 = vmatprep.subr.mxu0 0.0
    %1282 = vmatpush2.msra.mxu0 0.0
    %1283 = vmatprep.subr.mxu0 0.0
    %1284 = vmatpush2.msra.mxu0 0.0
    %1285 = vmatprep.subr.mxu0 0.0
    %1286 = vmatpush2.msra.mxu0 0.0
    %1287 = vmatprep.subr.mxu0 0.0
    %1288 = vmatpush2.msra.mxu0 0.0
    %1289 = vmatprep.subr.mxu0 0.0
    %1290 = vmatpush2.msra.mxu0 0.0
    %1291 = vmatprep.subr.mxu0 0.0
    %1292 = vmatpush2.msra.mxu0 %v1243
    %1293 = vmatprep.subr.mxu0 0.0
    %1294 = vmatpush2.msra.mxu0 %v1212
    %1295 = vmatprep.subr.mxu0 0.0
    %1296 = vmatpush2.msra.mxu0 %v1211
    %1297 = vmatprep.subr.mxu0 0.0
    %1298 = vmatpush2.msra.mxu0 %v1210
    %1299 = vmatprep.subr.mxu0 0.0
    %1300 = vmatpush2.msra.mxu0 %v1209
    %1301 = vmatprep.subr.mxu0 0.0
    %1302 = vmatpush2.msra.mxu0 %v1208
    %1303 = vmatprep.subr.mxu0 0.0
    %1304 = vmatpush2.msra.mxu0 %v1207
    %1305 = vmatprep.subr.mxu0 0.0
    %1306 = vmatpush2.msra.mxu0 %v1206
    %1307 = vmatprep.subr.mxu0 0.0
    %1308 = vmatpush2.msra.mxu0 %v1205
    %1309 = vmatprep.mubr.f32.mxu0 %v1240
    %1310 = vmatmul.mubr.f32.gmra.mxu0 %v1231
    %v1311 = vpop.f32.mrf.mxu0
    %v1312 = vadd.f32 0.0, %v1311
    %v1313 = vpop.f32.mrf.mxu0
    %1314 = vdwg.mxu0
    %v1315 = vadd.f32 %v1183, %v1312
    %s1316 = scalar_lea.vmem [#allocation2], 16
    %v1317 = vld [vmem:[%s1316] ss:$8 sm:$0x3]
    %s1318 = scalar_lea.vmem [#allocation2], 48
    %v1319 = vld [vmem:[%s1318] ss:$8 sm:$0x3]
    %s1320 = scalar_lea.vmem %s3, 1600
    %v1321 = vld [vmem:[%s1320] sm:$0xff]
    %v1322 = vld [vmem:[%s1320 + $0x8] sm:$0xff]
    %v1323 = vld [vmem:[%s1320 + $0x10] sm:$0xff]
    %v1324 = vld [vmem:[%s1320 + $0x18] sm:$0xff]
    %v1325 = vld [vmem:[%s1320 + $0x20] sm:$0xff]
    %v1326 = vld [vmem:[%s1320 + $0x28] sm:$0xff]
    %v1327 = vld [vmem:[%s1320 + $0x30] sm:$0xff]
    %v1328 = vld [vmem:[%s1320 + $0x38] sm:$0xff]
    %v1329 = vld [vmem:[%s1320 + $0x40] sm:$0xff]
    %v1330 = vld [vmem:[%s1320 + $0x48] sm:$0xff]
    %v1331 = vld [vmem:[%s1320 + $0x50] sm:$0xff]
    %v1332 = vld [vmem:[%s1320 + $0x58] sm:$0xff]
    %v1333 = vld [vmem:[%s1320 + $0x60] sm:$0xff]
    %v1334 = vld [vmem:[%s1320 + $0x68] sm:$0xff]
    %v1335 = vld [vmem:[%s1320 + $0x70] sm:$0xff]
    %v1336 = vld [vmem:[%s1320 + $0x78] sm:$0xff]
    %v1337 = vld [vmem:[%s1320 + $0x80] sm:$0xff]
    %v1338 = vld [vmem:[%s1320 + $0x88] sm:$0xff]
    %v1339 = vld [vmem:[%s1320 + $0x90] sm:$0xff]
    %v1340 = vld [vmem:[%s1320 + $0x98] sm:$0xff]
    %v1341 = vld [vmem:[%s1320 + $0xa0] sm:$0xff]
    %v1342 = vld [vmem:[%s1320 + $0xa8] sm:$0xff]
    %v1343 = vld [vmem:[%s1320 + $0xb0] sm:$0xff]
    %v1344 = vld [vmem:[%s1320 + $0xb8] sm:$0xff]
    %v1345 = vld [vmem:[%s1320 + $0xc0] sm:$0xf]
    %v1348 = vcombine.low %v1317, %v1319
    %v1350 = vunpack.c.l.s4 1966171168
    %v1351 = vunpack.c.0.s8 %v1350
    %v1352 = vlaneseq
    %v1353 = vshrl.u32 %v1352, 7
    %v1354 = vsub.s32 %v1351, %v1353
    %v1355 = vrot.slane %v1348, %v1354
    %v1356 = vcombine.high %v1355, %v1355
    %v1358 = vunpack.c.l.s4 1966171168
    %v1359 = vunpack.c.0.s8 %v1358
    %v1360 = vlaneseq
    %v1361 = vshrl.u32 %v1360, 7
    %v1362 = vsub.s32 %v1359, %v1361
    %v1363 = vrot.slane %v1355, %v1362
    %v1365 = vunpack.c.l.s4 1966171168
    %v1366 = vunpack.c.0.s8 %v1365
    %v1367 = vlaneseq
    %v1368 = vshrl.u32 %v1367, 7
    %v1369 = vsub.s32 %v1366, %v1368
    %v1370 = vrot.slane %v1356, %v1369
    %v1372 = vsel %vm152, %v1370, 0
    %v1375 = vsel %vm63, %v1345, 0
    %1377 = vmatprep.subr.mxu0 0.0
    %1378 = vmatpush1.msra.mxu0 %v1336
    %1379 = vmatprep.subr.mxu0 0.0
    %1380 = vmatpush1.msra.mxu0 %v1335
    %1381 = vmatprep.subr.mxu0 0.0
    %1382 = vmatpush1.msra.mxu0 %v1334
    %1383 = vmatprep.subr.mxu0 0.0
    %1384 = vmatpush1.msra.mxu0 %v1333
    %1385 = vmatprep.subr.mxu0 0.0
    %1386 = vmatpush1.msra.mxu0 %v1332
    %1387 = vmatprep.subr.mxu0 0.0
    %1388 = vmatpush1.msra.mxu0 %v1331
    %1389 = vmatprep.subr.mxu0 0.0
    %1390 = vmatpush1.msra.mxu0 %v1330
    %1391 = vmatprep.subr.mxu0 0.0
    %1392 = vmatpush1.msra.mxu0 %v1329
    %1393 = vmatprep.subr.mxu0 0.0
    %1394 = vmatpush1.msra.mxu0 %v1328
    %1395 = vmatprep.subr.mxu0 0.0
    %1396 = vmatpush1.msra.mxu0 %v1327
    %1397 = vmatprep.subr.mxu0 0.0
    %1398 = vmatpush1.msra.mxu0 %v1326
    %1399 = vmatprep.subr.mxu0 0.0
    %1400 = vmatpush1.msra.mxu0 %v1325
    %1401 = vmatprep.subr.mxu0 0.0
    %1402 = vmatpush1.msra.mxu0 %v1324
    %1403 = vmatprep.subr.mxu0 0.0
    %1404 = vmatpush1.msra.mxu0 %v1323
    %1405 = vmatprep.subr.mxu0 0.0
    %1406 = vmatpush1.msra.mxu0 %v1322
    %1407 = vmatprep.subr.mxu0 0.0
    %1408 = vmatpush1.msra.mxu0 %v1321
    %1409 = vmatprep.subr.mxu0 0.0
    %1410 = vmatpush2.msra.mxu0 0.0
    %1411 = vmatprep.subr.mxu0 0.0
    %1412 = vmatpush2.msra.mxu0 0.0
    %1413 = vmatprep.subr.mxu0 0.0
    %1414 = vmatpush2.msra.mxu0 0.0
    %1415 = vmatprep.subr.mxu0 0.0
    %1416 = vmatpush2.msra.mxu0 0.0
    %1417 = vmatprep.subr.mxu0 0.0
    %1418 = vmatpush2.msra.mxu0 0.0
    %1419 = vmatprep.subr.mxu0 0.0
    %1420 = vmatpush2.msra.mxu0 0.0
    %1421 = vmatprep.subr.mxu0 0.0
    %1422 = vmatpush2.msra.mxu0 0.0
    %1423 = vmatprep.subr.mxu0 0.0
    %1424 = vmatpush2.msra.mxu0 %v1375
    %1425 = vmatprep.subr.mxu0 0.0
    %1426 = vmatpush2.msra.mxu0 %v1344
    %1427 = vmatprep.subr.mxu0 0.0
    %1428 = vmatpush2.msra.mxu0 %v1343
    %1429 = vmatprep.subr.mxu0 0.0
    %1430 = vmatpush2.msra.mxu0 %v1342
    %1431 = vmatprep.subr.mxu0 0.0
    %1432 = vmatpush2.msra.mxu0 %v1341
    %1433 = vmatprep.subr.mxu0 0.0
    %1434 = vmatpush2.msra.mxu0 %v1340
    %1435 = vmatprep.subr.mxu0 0.0
    %1436 = vmatpush2.msra.mxu0 %v1339
    %1437 = vmatprep.subr.mxu0 0.0
    %1438 = vmatpush2.msra.mxu0 %v1338
    %1439 = vmatprep.subr.mxu0 0.0
    %1440 = vmatpush2.msra.mxu0 %v1337
    %1441 = vmatprep.mubr.f32.mxu0 %v1372
    %1442 = vmatmul.mubr.f32.gmra.mxu0 %v1363
    %v1443 = vpop.f32.mrf.mxu0
    %v1444 = vadd.f32 0.0, %v1443
    %v1445 = vpop.f32.mrf.mxu0
    %1446 = vdwg.mxu0
    %v1447 = vadd.f32 %v1315, %v1444
    %s1448 = scalar_lea.vmem [#allocation2], 17
    %v1449 = vld [vmem:[%s1448] ss:$8 sm:$0x3]
    %s1450 = scalar_lea.vmem [#allocation2], 49
    %v1451 = vld [vmem:[%s1450] ss:$8 sm:$0x3]
    %s1452 = scalar_lea.vmem %s3, 1800
    %v1453 = vld [vmem:[%s1452] sm:$0xff]
    %v1454 = vld [vmem:[%s1452 + $0x8] sm:$0xff]
    %v1455 = vld [vmem:[%s1452 + $0x10] sm:$0xff]
    %v1456 = vld [vmem:[%s1452 + $0x18] sm:$0xff]
    %v1457 = vld [vmem:[%s1452 + $0x20] sm:$0xff]
    %v1458 = vld [vmem:[%s1452 + $0x28] sm:$0xff]
    %v1459 = vld [vmem:[%s1452 + $0x30] sm:$0xff]
    %v1460 = vld [vmem:[%s1452 + $0x38] sm:$0xff]
    %v1461 = vld [vmem:[%s1452 + $0x40] sm:$0xff]
    %v1462 = vld [vmem:[%s1452 + $0x48] sm:$0xff]
    %v1463 = vld [vmem:[%s1452 + $0x50] sm:$0xff]
    %v1464 = vld [vmem:[%s1452 + $0x58] sm:$0xff]
    %v1465 = vld [vmem:[%s1452 + $0x60] sm:$0xff]
    %v1466 = vld [vmem:[%s1452 + $0x68] sm:$0xff]
    %v1467 = vld [vmem:[%s1452 + $0x70] sm:$0xff]
    %v1468 = vld [vmem:[%s1452 + $0x78] sm:$0xff]
    %v1469 = vld [vmem:[%s1452 + $0x80] sm:$0xff]
    %v1470 = vld [vmem:[%s1452 + $0x88] sm:$0xff]
    %v1471 = vld [vmem:[%s1452 + $0x90] sm:$0xff]
    %v1472 = vld [vmem:[%s1452 + $0x98] sm:$0xff]
    %v1473 = vld [vmem:[%s1452 + $0xa0] sm:$0xff]
    %v1474 = vld [vmem:[%s1452 + $0xa8] sm:$0xff]
    %v1475 = vld [vmem:[%s1452 + $0xb0] sm:$0xff]
    %v1476 = vld [vmem:[%s1452 + $0xb8] sm:$0xff]
    %v1477 = vld [vmem:[%s1452 + $0xc0] sm:$0xf]
    %v1480 = vcombine.low %v1449, %v1451
    %v1482 = vunpack.c.l.s4 1966171168
    %v1483 = vunpack.c.0.s8 %v1482
    %v1484 = vlaneseq
    %v1485 = vshrl.u32 %v1484, 7
    %v1486 = vsub.s32 %v1483, %v1485
    %v1487 = vrot.slane %v1480, %v1486
    %v1488 = vcombine.high %v1487, %v1487
    %v1490 = vunpack.c.l.s4 1966171168
    %v1491 = vunpack.c.0.s8 %v1490
    %v1492 = vlaneseq
    %v1493 = vshrl.u32 %v1492, 7
    %v1494 = vsub.s32 %v1491, %v1493
    %v1495 = vrot.slane %v1487, %v1494
    %v1497 = vunpack.c.l.s4 1966171168
    %v1498 = vunpack.c.0.s8 %v1497
    %v1499 = vlaneseq
    %v1500 = vshrl.u32 %v1499, 7
    %v1501 = vsub.s32 %v1498, %v1500
    %v1502 = vrot.slane %v1488, %v1501
    %v1504 = vsel %vm152, %v1502, 0
    %v1507 = vsel %vm63, %v1477, 0
    %1509 = vmatprep.subr.mxu0 0.0
    %1510 = vmatpush1.msra.mxu0 %v1468
    %1511 = vmatprep.subr.mxu0 0.0
    %1512 = vmatpush1.msra.mxu0 %v1467
    %1513 = vmatprep.subr.mxu0 0.0
    %1514 = vmatpush1.msra.mxu0 %v1466
    %1515 = vmatprep.subr.mxu0 0.0
    %1516 = vmatpush1.msra.mxu0 %v1465
    %1517 = vmatprep.subr.mxu0 0.0
    %1518 = vmatpush1.msra.mxu0 %v1464
    %1519 = vmatprep.subr.mxu0 0.0
    %1520 = vmatpush1.msra.mxu0 %v1463
    %1521 = vmatprep.subr.mxu0 0.0
    %1522 = vmatpush1.msra.mxu0 %v1462
    %1523 = vmatprep.subr.mxu0 0.0
    %1524 = vmatpush1.msra.mxu0 %v1461
    %1525 = vmatprep.subr.mxu0 0.0
    %1526 = vmatpush1.msra.mxu0 %v1460
    %1527 = vmatprep.subr.mxu0 0.0
    %1528 = vmatpush1.msra.mxu0 %v1459
    %1529 = vmatprep.subr.mxu0 0.0
    %1530 = vmatpush1.msra.mxu0 %v1458
    %1531 = vmatprep.subr.mxu0 0.0
    %1532 = vmatpush1.msra.mxu0 %v1457
    %1533 = vmatprep.subr.mxu0 0.0
    %1534 = vmatpush1.msra.mxu0 %v1456
    %1535 = vmatprep.subr.mxu0 0.0
    %1536 = vmatpush1.msra.mxu0 %v1455
    %1537 = vmatprep.subr.mxu0 0.0
    %1538 = vmatpush1.msra.mxu0 %v1454
    %1539 = vmatprep.subr.mxu0 0.0
    %1540 = vmatpush1.msra.mxu0 %v1453
    %1541 = vmatprep.subr.mxu0 0.0
    %1542 = vmatpush2.msra.mxu0 0.0
    %1543 = vmatprep.subr.mxu0 0.0
    %1544 = vmatpush2.msra.mxu0 0.0
    %1545 = vmatprep.subr.mxu0 0.0
    %1546 = vmatpush2.msra.mxu0 0.0
    %1547 = vmatprep.subr.mxu0 0.0
    %1548 = vmatpush2.msra.mxu0 0.0
    %1549 = vmatprep.subr.mxu0 0.0
    %1550 = vmatpush2.msra.mxu0 0.0
    %1551 = vmatprep.subr.mxu0 0.0
    %1552 = vmatpush2.msra.mxu0 0.0
    %1553 = vmatprep.subr.mxu0 0.0
    %1554 = vmatpush2.msra.mxu0 0.0
    %1555 = vmatprep.subr.mxu0 0.0
    %1556 = vmatpush2.msra.mxu0 %v1507
    %1557 = vmatprep.subr.mxu0 0.0
    %1558 = vmatpush2.msra.mxu0 %v1476
    %1559 = vmatprep.subr.mxu0 0.0
    %1560 = vmatpush2.msra.mxu0 %v1475
    %1561 = vmatprep.subr.mxu0 0.0
    %1562 = vmatpush2.msra.mxu0 %v1474
    %1563 = vmatprep.subr.mxu0 0.0
    %1564 = vmatpush2.msra.mxu0 %v1473
    %1565 = vmatprep.subr.mxu0 0.0
    %1566 = vmatpush2.msra.mxu0 %v1472
    %1567 = vmatprep.subr.mxu0 0.0
    %1568 = vmatpush2.msra.mxu0 %v1471
    %1569 = vmatprep.subr.mxu0 0.0
    %1570 = vmatpush2.msra.mxu0 %v1470
    %1571 = vmatprep.subr.mxu0 0.0
    %1572 = vmatpush2.msra.mxu0 %v1469
    %1573 = vmatprep.mubr.f32.mxu0 %v1504
    %1574 = vmatmul.mubr.f32.gmra.mxu0 %v1495
    %v1575 = vpop.f32.mrf.mxu0
    %v1576 = vadd.f32 0.0, %v1575
    %v1577 = vpop.f32.mrf.mxu0
    %1578 = vdwg.mxu0
    %v1579 = vadd.f32 %v1447, %v1576
    %s1580 = scalar_lea.vmem [#allocation2], 18
    %v1581 = vld [vmem:[%s1580] ss:$8 sm:$0x3]
    %s1582 = scalar_lea.vmem [#allocation2], 50
    %v1583 = vld [vmem:[%s1582] ss:$8 sm:$0x3]
    %s1584 = scalar_lea.vmem %s3, 2000
    %v1585 = vld [vmem:[%s1584] sm:$0xff]
    %v1586 = vld [vmem:[%s1584 + $0x8] sm:$0xff]
    %v1587 = vld [vmem:[%s1584 + $0x10] sm:$0xff]
    %v1588 = vld [vmem:[%s1584 + $0x18] sm:$0xff]
    %v1589 = vld [vmem:[%s1584 + $0x20] sm:$0xff]
    %v1590 = vld [vmem:[%s1584 + $0x28] sm:$0xff]
    %v1591 = vld [vmem:[%s1584 + $0x30] sm:$0xff]
    %v1592 = vld [vmem:[%s1584 + $0x38] sm:$0xff]
    %v1593 = vld [vmem:[%s1584 + $0x40] sm:$0xff]
    %v1594 = vld [vmem:[%s1584 + $0x48] sm:$0xff]
    %v1595 = vld [vmem:[%s1584 + $0x50] sm:$0xff]
    %v1596 = vld [vmem:[%s1584 + $0x58] sm:$0xff]
    %v1597 = vld [vmem:[%s1584 + $0x60] sm:$0xff]
    %v1598 = vld [vmem:[%s1584 + $0x68] sm:$0xff]
    %v1599 = vld [vmem:[%s1584 + $0x70] sm:$0xff]
    %v1600 = vld [vmem:[%s1584 + $0x78] sm:$0xff]
    %v1601 = vld [vmem:[%s1584 + $0x80] sm:$0xff]
    %v1602 = vld [vmem:[%s1584 + $0x88] sm:$0xff]
    %v1603 = vld [vmem:[%s1584 + $0x90] sm:$0xff]
    %v1604 = vld [vmem:[%s1584 + $0x98] sm:$0xff]
    %v1605 = vld [vmem:[%s1584 + $0xa0] sm:$0xff]
    %v1606 = vld [vmem:[%s1584 + $0xa8] sm:$0xff]
    %v1607 = vld [vmem:[%s1584 + $0xb0] sm:$0xff]
    %v1608 = vld [vmem:[%s1584 + $0xb8] sm:$0xff]
    %v1609 = vld [vmem:[%s1584 + $0xc0] sm:$0xf]
    %v1612 = vcombine.low %v1581, %v1583
    %v1614 = vunpack.c.l.s4 1966171168
    %v1615 = vunpack.c.0.s8 %v1614
    %v1616 = vlaneseq
    %v1617 = vshrl.u32 %v1616, 7
    %v1618 = vsub.s32 %v1615, %v1617
    %v1619 = vrot.slane %v1612, %v1618
    %v1620 = vcombine.high %v1619, %v1619
    %v1622 = vunpack.c.l.s4 1966171168
    %v1623 = vunpack.c.0.s8 %v1622
    %v1624 = vlaneseq
    %v1625 = vshrl.u32 %v1624, 7
    %v1626 = vsub.s32 %v1623, %v1625
    %v1627 = vrot.slane %v1619, %v1626
    %v1629 = vunpack.c.l.s4 1966171168
    %v1630 = vunpack.c.0.s8 %v1629
    %v1631 = vlaneseq
    %v1632 = vshrl.u32 %v1631, 7
    %v1633 = vsub.s32 %v1630, %v1632
    %v1634 = vrot.slane %v1620, %v1633
    %v1636 = vsel %vm152, %v1634, 0
    %v1639 = vsel %vm63, %v1609, 0
    %1641 = vmatprep.subr.mxu0 0.0
    %1642 = vmatpush1.msra.mxu0 %v1600
    %1643 = vmatprep.subr.mxu0 0.0
    %1644 = vmatpush1.msra.mxu0 %v1599
    %1645 = vmatprep.subr.mxu0 0.0
    %1646 = vmatpush1.msra.mxu0 %v1598
    %1647 = vmatprep.subr.mxu0 0.0
    %1648 = vmatpush1.msra.mxu0 %v1597
    %1649 = vmatprep.subr.mxu0 0.0
    %1650 = vmatpush1.msra.mxu0 %v1596
    %1651 = vmatprep.subr.mxu0 0.0
    %1652 = vmatpush1.msra.mxu0 %v1595
    %1653 = vmatprep.subr.mxu0 0.0
    %1654 = vmatpush1.msra.mxu0 %v1594
    %1655 = vmatprep.subr.mxu0 0.0
    %1656 = vmatpush1.msra.mxu0 %v1593
    %1657 = vmatprep.subr.mxu0 0.0
    %1658 = vmatpush1.msra.mxu0 %v1592
    %1659 = vmatprep.subr.mxu0 0.0
    %1660 = vmatpush1.msra.mxu0 %v1591
    %1661 = vmatprep.subr.mxu0 0.0
    %1662 = vmatpush1.msra.mxu0 %v1590
    %1663 = vmatprep.subr.mxu0 0.0
    %1664 = vmatpush1.msra.mxu0 %v1589
    %1665 = vmatprep.subr.mxu0 0.0
    %1666 = vmatpush1.msra.mxu0 %v1588
    %1667 = vmatprep.subr.mxu0 0.0
    %1668 = vmatpush1.msra.mxu0 %v1587
    %1669 = vmatprep.subr.mxu0 0.0
    %1670 = vmatpush1.msra.mxu0 %v1586
    %1671 = vmatprep.subr.mxu0 0.0
    %1672 = vmatpush1.msra.mxu0 %v1585
    %1673 = vmatprep.subr.mxu0 0.0
    %1674 = vmatpush2.msra.mxu0 0.0
    %1675 = vmatprep.subr.mxu0 0.0
    %1676 = vmatpush2.msra.mxu0 0.0
    %1677 = vmatprep.subr.mxu0 0.0
    %1678 = vmatpush2.msra.mxu0 0.0
    %1679 = vmatprep.subr.mxu0 0.0
    %1680 = vmatpush2.msra.mxu0 0.0
    %1681 = vmatprep.subr.mxu0 0.0
    %1682 = vmatpush2.msra.mxu0 0.0
    %1683 = vmatprep.subr.mxu0 0.0
    %1684 = vmatpush2.msra.mxu0 0.0
    %1685 = vmatprep.subr.mxu0 0.0
    %1686 = vmatpush2.msra.mxu0 0.0
    %1687 = vmatprep.subr.mxu0 0.0
    %1688 = vmatpush2.msra.mxu0 %v1639
    %1689 = vmatprep.subr.mxu0 0.0
    %1690 = vmatpush2.msra.mxu0 %v1608
    %1691 = vmatprep.subr.mxu0 0.0
    %1692 = vmatpush2.msra.mxu0 %v1607
    %1693 = vmatprep.subr.mxu0 0.0
    %1694 = vmatpush2.msra.mxu0 %v1606
    %1695 = vmatprep.subr.mxu0 0.0
    %1696 = vmatpush2.msra.mxu0 %v1605
    %1697 = vmatprep.subr.mxu0 0.0
    %1698 = vmatpush2.msra.mxu0 %v1604
    %1699 = vmatprep.subr.mxu0 0.0
    %1700 = vmatpush2.msra.mxu0 %v1603
    %1701 = vmatprep.subr.mxu0 0.0
    %1702 = vmatpush2.msra.mxu0 %v1602
    %1703 = vmatprep.subr.mxu0 0.0
    %1704 = vmatpush2.msra.mxu0 %v1601
    %1705 = vmatprep.mubr.f32.mxu0 %v1636
    %1706 = vmatmul.mubr.f32.gmra.mxu0 %v1627
    %v1707 = vpop.f32.mrf.mxu0
    %v1708 = vadd.f32 0.0, %v1707
    %v1709 = vpop.f32.mrf.mxu0
    %1710 = vdwg.mxu0
    %v1711 = vadd.f32 %v1579, %v1708
    %s1712 = scalar_lea.vmem [#allocation2], 19
    %v1713 = vld [vmem:[%s1712] ss:$8 sm:$0x3]
    %s1714 = scalar_lea.vmem [#allocation2], 51
    %v1715 = vld [vmem:[%s1714] ss:$8 sm:$0x3]
    %s1716 = scalar_lea.vmem %s3, 2200
    %v1717 = vld [vmem:[%s1716] sm:$0xff]
    %v1718 = vld [vmem:[%s1716 + $0x8] sm:$0xff]
    %v1719 = vld [vmem:[%s1716 + $0x10] sm:$0xff]
    %v1720 = vld [vmem:[%s1716 + $0x18] sm:$0xff]
    %v1721 = vld [vmem:[%s1716 + $0x20] sm:$0xff]
    %v1722 = vld [vmem:[%s1716 + $0x28] sm:$0xff]
    %v1723 = vld [vmem:[%s1716 + $0x30] sm:$0xff]
    %v1724 = vld [vmem:[%s1716 + $0x38] sm:$0xff]
    %v1725 = vld [vmem:[%s1716 + $0x40] sm:$0xff]
    %v1726 = vld [vmem:[%s1716 + $0x48] sm:$0xff]
    %v1727 = vld [vmem:[%s1716 + $0x50] sm:$0xff]
    %v1728 = vld [vmem:[%s1716 + $0x58] sm:$0xff]
    %v1729 = vld [vmem:[%s1716 + $0x60] sm:$0xff]
    %v1730 = vld [vmem:[%s1716 + $0x68] sm:$0xff]
    %v1731 = vld [vmem:[%s1716 + $0x70] sm:$0xff]
    %v1732 = vld [vmem:[%s1716 + $0x78] sm:$0xff]
    %v1733 = vld [vmem:[%s1716 + $0x80] sm:$0xff]
    %v1734 = vld [vmem:[%s1716 + $0x88] sm:$0xff]
    %v1735 = vld [vmem:[%s1716 + $0x90] sm:$0xff]
    %v1736 = vld [vmem:[%s1716 + $0x98] sm:$0xff]
    %v1737 = vld [vmem:[%s1716 + $0xa0] sm:$0xff]
    %v1738 = vld [vmem:[%s1716 + $0xa8] sm:$0xff]
    %v1739 = vld [vmem:[%s1716 + $0xb0] sm:$0xff]
    %v1740 = vld [vmem:[%s1716 + $0xb8] sm:$0xff]
    %v1741 = vld [vmem:[%s1716 + $0xc0] sm:$0xf]
    %v1744 = vcombine.low %v1713, %v1715
    %v1746 = vunpack.c.l.s4 1966171168
    %v1747 = vunpack.c.0.s8 %v1746
    %v1748 = vlaneseq
    %v1749 = vshrl.u32 %v1748, 7
    %v1750 = vsub.s32 %v1747, %v1749
    %v1751 = vrot.slane %v1744, %v1750
    %v1752 = vcombine.high %v1751, %v1751
    %v1754 = vunpack.c.l.s4 1966171168
    %v1755 = vunpack.c.0.s8 %v1754
    %v1756 = vlaneseq
    %v1757 = vshrl.u32 %v1756, 7
    %v1758 = vsub.s32 %v1755, %v1757
    %v1759 = vrot.slane %v1751, %v1758
    %v1761 = vunpack.c.l.s4 1966171168
    %v1762 = vunpack.c.0.s8 %v1761
    %v1763 = vlaneseq
    %v1764 = vshrl.u32 %v1763, 7
    %v1765 = vsub.s32 %v1762, %v1764
    %v1766 = vrot.slane %v1752, %v1765
    %v1768 = vsel %vm152, %v1766, 0
    %v1771 = vsel %vm63, %v1741, 0
    %1773 = vmatprep.subr.mxu0 0.0
    %1774 = vmatpush1.msra.mxu0 %v1732
    %1775 = vmatprep.subr.mxu0 0.0
    %1776 = vmatpush1.msra.mxu0 %v1731
    %1777 = vmatprep.subr.mxu0 0.0
    %1778 = vmatpush1.msra.mxu0 %v1730
    %1779 = vmatprep.subr.mxu0 0.0
    %1780 = vmatpush1.msra.mxu0 %v1729
    %1781 = vmatprep.subr.mxu0 0.0
    %1782 = vmatpush1.msra.mxu0 %v1728
    %1783 = vmatprep.subr.mxu0 0.0
    %1784 = vmatpush1.msra.mxu0 %v1727
    %1785 = vmatprep.subr.mxu0 0.0
    %1786 = vmatpush1.msra.mxu0 %v1726
    %1787 = vmatprep.subr.mxu0 0.0
    %1788 = vmatpush1.msra.mxu0 %v1725
    %1789 = vmatprep.subr.mxu0 0.0
    %1790 = vmatpush1.msra.mxu0 %v1724
    %1791 = vmatprep.subr.mxu0 0.0
    %1792 = vmatpush1.msra.mxu0 %v1723
    %1793 = vmatprep.subr.mxu0 0.0
    %1794 = vmatpush1.msra.mxu0 %v1722
    %1795 = vmatprep.subr.mxu0 0.0
    %1796 = vmatpush1.msra.mxu0 %v1721
    %1797 = vmatprep.subr.mxu0 0.0
    %1798 = vmatpush1.msra.mxu0 %v1720
    %1799 = vmatprep.subr.mxu0 0.0
    %1800 = vmatpush1.msra.mxu0 %v1719
    %1801 = vmatprep.subr.mxu0 0.0
    %1802 = vmatpush1.msra.mxu0 %v1718
    %1803 = vmatprep.subr.mxu0 0.0
    %1804 = vmatpush1.msra.mxu0 %v1717
    %1805 = vmatprep.subr.mxu0 0.0
    %1806 = vmatpush2.msra.mxu0 0.0
    %1807 = vmatprep.subr.mxu0 0.0
    %1808 = vmatpush2.msra.mxu0 0.0
    %1809 = vmatprep.subr.mxu0 0.0
    %1810 = vmatpush2.msra.mxu0 0.0
    %1811 = vmatprep.subr.mxu0 0.0
    %1812 = vmatpush2.msra.mxu0 0.0
    %1813 = vmatprep.subr.mxu0 0.0
    %1814 = vmatpush2.msra.mxu0 0.0
    %1815 = vmatprep.subr.mxu0 0.0
    %1816 = vmatpush2.msra.mxu0 0.0
    %1817 = vmatprep.subr.mxu0 0.0
    %1818 = vmatpush2.msra.mxu0 0.0
    %1819 = vmatprep.subr.mxu0 0.0
    %1820 = vmatpush2.msra.mxu0 %v1771
    %1821 = vmatprep.subr.mxu0 0.0
    %1822 = vmatpush2.msra.mxu0 %v1740
    %1823 = vmatprep.subr.mxu0 0.0
    %1824 = vmatpush2.msra.mxu0 %v1739
    %1825 = vmatprep.subr.mxu0 0.0
    %1826 = vmatpush2.msra.mxu0 %v1738
    %1827 = vmatprep.subr.mxu0 0.0
    %1828 = vmatpush2.msra.mxu0 %v1737
    %1829 = vmatprep.subr.mxu0 0.0
    %1830 = vmatpush2.msra.mxu0 %v1736
    %1831 = vmatprep.subr.mxu0 0.0
    %1832 = vmatpush2.msra.mxu0 %v1735
    %1833 = vmatprep.subr.mxu0 0.0
    %1834 = vmatpush2.msra.mxu0 %v1734
    %1835 = vmatprep.subr.mxu0 0.0
    %1836 = vmatpush2.msra.mxu0 %v1733
    %1837 = vmatprep.mubr.f32.mxu0 %v1768
    %1838 = vmatmul.mubr.f32.gmra.mxu0 %v1759
    %v1839 = vpop.f32.mrf.mxu0
    %v1840 = vadd.f32 0.0, %v1839
    %v1841 = vpop.f32.mrf.mxu0
    %1842 = vdwg.mxu0
    %v1843 = vadd.f32 %v1711, %v1840
    %s1844 = scalar_lea.vmem [#allocation2], 20
    %v1845 = vld [vmem:[%s1844] ss:$8 sm:$0x3]
    %s1846 = scalar_lea.vmem [#allocation2], 52
    %v1847 = vld [vmem:[%s1846] ss:$8 sm:$0x3]
    %s1848 = scalar_lea.vmem %s3, 2400
    %v1849 = vld [vmem:[%s1848] sm:$0xff]
    %v1850 = vld [vmem:[%s1848 + $0x8] sm:$0xff]
    %v1851 = vld [vmem:[%s1848 + $0x10] sm:$0xff]
    %v1852 = vld [vmem:[%s1848 + $0x18] sm:$0xff]
    %v1853 = vld [vmem:[%s1848 + $0x20] sm:$0xff]
    %v1854 = vld [vmem:[%s1848 + $0x28] sm:$0xff]
    %v1855 = vld [vmem:[%s1848 + $0x30] sm:$0xff]
    %v1856 = vld [vmem:[%s1848 + $0x38] sm:$0xff]
    %v1857 = vld [vmem:[%s1848 + $0x40] sm:$0xff]
    %v1858 = vld [vmem:[%s1848 + $0x48] sm:$0xff]
    %v1859 = vld [vmem:[%s1848 + $0x50] sm:$0xff]
    %v1860 = vld [vmem:[%s1848 + $0x58] sm:$0xff]
    %v1861 = vld [vmem:[%s1848 + $0x60] sm:$0xff]
    %v1862 = vld [vmem:[%s1848 + $0x68] sm:$0xff]
    %v1863 = vld [vmem:[%s1848 + $0x70] sm:$0xff]
    %v1864 = vld [vmem:[%s1848 + $0x78] sm:$0xff]
    %v1865 = vld [vmem:[%s1848 + $0x80] sm:$0xff]
    %v1866 = vld [vmem:[%s1848 + $0x88] sm:$0xff]
    %v1867 = vld [vmem:[%s1848 + $0x90] sm:$0xff]
    %v1868 = vld [vmem:[%s1848 + $0x98] sm:$0xff]
    %v1869 = vld [vmem:[%s1848 + $0xa0] sm:$0xff]
    %v1870 = vld [vmem:[%s1848 + $0xa8] sm:$0xff]
    %v1871 = vld [vmem:[%s1848 + $0xb0] sm:$0xff]
    %v1872 = vld [vmem:[%s1848 + $0xb8] sm:$0xff]
    %v1873 = vld [vmem:[%s1848 + $0xc0] sm:$0xf]
    %v1876 = vcombine.low %v1845, %v1847
    %v1878 = vunpack.c.l.s4 1966171168
    %v1879 = vunpack.c.0.s8 %v1878
    %v1880 = vlaneseq
    %v1881 = vshrl.u32 %v1880, 7
    %v1882 = vsub.s32 %v1879, %v1881
    %v1883 = vrot.slane %v1876, %v1882
    %v1884 = vcombine.high %v1883, %v1883
    %v1886 = vunpack.c.l.s4 1966171168
    %v1887 = vunpack.c.0.s8 %v1886
    %v1888 = vlaneseq
    %v1889 = vshrl.u32 %v1888, 7
    %v1890 = vsub.s32 %v1887, %v1889
    %v1891 = vrot.slane %v1883, %v1890
    %v1893 = vunpack.c.l.s4 1966171168
    %v1894 = vunpack.c.0.s8 %v1893
    %v1895 = vlaneseq
    %v1896 = vshrl.u32 %v1895, 7
    %v1897 = vsub.s32 %v1894, %v1896
    %v1898 = vrot.slane %v1884, %v1897
    %v1900 = vsel %vm152, %v1898, 0
    %v1903 = vsel %vm63, %v1873, 0
    %1905 = vmatprep.subr.mxu0 0.0
    %1906 = vmatpush1.msra.mxu0 %v1864
    %1907 = vmatprep.subr.mxu0 0.0
    %1908 = vmatpush1.msra.mxu0 %v1863
    %1909 = vmatprep.subr.mxu0 0.0
    %1910 = vmatpush1.msra.mxu0 %v1862
    %1911 = vmatprep.subr.mxu0 0.0
    %1912 = vmatpush1.msra.mxu0 %v1861
    %1913 = vmatprep.subr.mxu0 0.0
    %1914 = vmatpush1.msra.mxu0 %v1860
    %1915 = vmatprep.subr.mxu0 0.0
    %1916 = vmatpush1.msra.mxu0 %v1859
    %1917 = vmatprep.subr.mxu0 0.0
    %1918 = vmatpush1.msra.mxu0 %v1858
    %1919 = vmatprep.subr.mxu0 0.0
    %1920 = vmatpush1.msra.mxu0 %v1857
    %1921 = vmatprep.subr.mxu0 0.0
    %1922 = vmatpush1.msra.mxu0 %v1856
    %1923 = vmatprep.subr.mxu0 0.0
    %1924 = vmatpush1.msra.mxu0 %v1855
    %1925 = vmatprep.subr.mxu0 0.0
    %1926 = vmatpush1.msra.mxu0 %v1854
    %1927 = vmatprep.subr.mxu0 0.0
    %1928 = vmatpush1.msra.mxu0 %v1853
    %1929 = vmatprep.subr.mxu0 0.0
    %1930 = vmatpush1.msra.mxu0 %v1852
    %1931 = vmatprep.subr.mxu0 0.0
    %1932 = vmatpush1.msra.mxu0 %v1851
    %1933 = vmatprep.subr.mxu0 0.0
    %1934 = vmatpush1.msra.mxu0 %v1850
    %1935 = vmatprep.subr.mxu0 0.0
    %1936 = vmatpush1.msra.mxu0 %v1849
    %1937 = vmatprep.subr.mxu0 0.0
    %1938 = vmatpush2.msra.mxu0 0.0
    %1939 = vmatprep.subr.mxu0 0.0
    %1940 = vmatpush2.msra.mxu0 0.0
    %1941 = vmatprep.subr.mxu0 0.0
    %1942 = vmatpush2.msra.mxu0 0.0
    %1943 = vmatprep.subr.mxu0 0.0
    %1944 = vmatpush2.msra.mxu0 0.0
    %1945 = vmatprep.subr.mxu0 0.0
    %1946 = vmatpush2.msra.mxu0 0.0
    %1947 = vmatprep.subr.mxu0 0.0
    %1948 = vmatpush2.msra.mxu0 0.0
    %1949 = vmatprep.subr.mxu0 0.0
    %1950 = vmatpush2.msra.mxu0 0.0
    %1951 = vmatprep.subr.mxu0 0.0
    %1952 = vmatpush2.msra.mxu0 %v1903
    %1953 = vmatprep.subr.mxu0 0.0
    %1954 = vmatpush2.msra.mxu0 %v1872
    %1955 = vmatprep.subr.mxu0 0.0
    %1956 = vmatpush2.msra.mxu0 %v1871
    %1957 = vmatprep.subr.mxu0 0.0
    %1958 = vmatpush2.msra.mxu0 %v1870
    %1959 = vmatprep.subr.mxu0 0.0
    %1960 = vmatpush2.msra.mxu0 %v1869
    %1961 = vmatprep.subr.mxu0 0.0
    %1962 = vmatpush2.msra.mxu0 %v1868
    %1963 = vmatprep.subr.mxu0 0.0
    %1964 = vmatpush2.msra.mxu0 %v1867
    %1965 = vmatprep.subr.mxu0 0.0
    %1966 = vmatpush2.msra.mxu0 %v1866
    %1967 = vmatprep.subr.mxu0 0.0
    %1968 = vmatpush2.msra.mxu0 %v1865
    %1969 = vmatprep.mubr.f32.mxu0 %v1900
    %1970 = vmatmul.mubr.f32.gmra.mxu0 %v1891
    %v1971 = vpop.f32.mrf.mxu0
    %v1972 = vadd.f32 0.0, %v1971
    %v1973 = vpop.f32.mrf.mxu0
    %1974 = vdwg.mxu0
    %v1975 = vadd.f32 %v1843, %v1972
    %s1976 = scalar_lea.vmem [#allocation2], 21
    %v1977 = vld [vmem:[%s1976] ss:$8 sm:$0x3]
    %s1978 = scalar_lea.vmem [#allocation2], 53
    %v1979 = vld [vmem:[%s1978] ss:$8 sm:$0x3]
    %s1980 = scalar_lea.vmem %s3, 2600
    %v1981 = vld [vmem:[%s1980] sm:$0xff]
    %v1982 = vld [vmem:[%s1980 + $0x8] sm:$0xff]
    %v1983 = vld [vmem:[%s1980 + $0x10] sm:$0xff]
    %v1984 = vld [vmem:[%s1980 + $0x18] sm:$0xff]
    %v1985 = vld [vmem:[%s1980 + $0x20] sm:$0xff]
    %v1986 = vld [vmem:[%s1980 + $0x28] sm:$0xff]
    %v1987 = vld [vmem:[%s1980 + $0x30] sm:$0xff]
    %v1988 = vld [vmem:[%s1980 + $0x38] sm:$0xff]
    %v1989 = vld [vmem:[%s1980 + $0x40] sm:$0xff]
    %v1990 = vld [vmem:[%s1980 + $0x48] sm:$0xff]
    %v1991 = vld [vmem:[%s1980 + $0x50] sm:$0xff]
    %v1992 = vld [vmem:[%s1980 + $0x58] sm:$0xff]
    %v1993 = vld [vmem:[%s1980 + $0x60] sm:$0xff]
    %v1994 = vld [vmem:[%s1980 + $0x68] sm:$0xff]
    %v1995 = vld [vmem:[%s1980 + $0x70] sm:$0xff]
    %v1996 = vld [vmem:[%s1980 + $0x78] sm:$0xff]
    %v1997 = vld [vmem:[%s1980 + $0x80] sm:$0xff]
    %v1998 = vld [vmem:[%s1980 + $0x88] sm:$0xff]
    %v1999 = vld [vmem:[%s1980 + $0x90] sm:$0xff]
    %v2000 = vld [vmem:[%s1980 + $0x98] sm:$0xff]
    %v2001 = vld [vmem:[%s1980 + $0xa0] sm:$0xff]
    %v2002 = vld [vmem:[%s1980 + $0xa8] sm:$0xff]
    %v2003 = vld [vmem:[%s1980 + $0xb0] sm:$0xff]
    %v2004 = vld [vmem:[%s1980 + $0xb8] sm:$0xff]
    %v2005 = vld [vmem:[%s1980 + $0xc0] sm:$0xf]
    %v2008 = vcombine.low %v1977, %v1979
    %v2010 = vunpack.c.l.s4 1966171168
    %v2011 = vunpack.c.0.s8 %v2010
    %v2012 = vlaneseq
    %v2013 = vshrl.u32 %v2012, 7
    %v2014 = vsub.s32 %v2011, %v2013
    %v2015 = vrot.slane %v2008, %v2014
    %v2016 = vcombine.high %v2015, %v2015
    %v2018 = vunpack.c.l.s4 1966171168
    %v2019 = vunpack.c.0.s8 %v2018
    %v2020 = vlaneseq
    %v2021 = vshrl.u32 %v2020, 7
    %v2022 = vsub.s32 %v2019, %v2021
    %v2023 = vrot.slane %v2015, %v2022
    %v2025 = vunpack.c.l.s4 1966171168
    %v2026 = vunpack.c.0.s8 %v2025
    %v2027 = vlaneseq
    %v2028 = vshrl.u32 %v2027, 7
    %v2029 = vsub.s32 %v2026, %v2028
    %v2030 = vrot.slane %v2016, %v2029
    %v2032 = vsel %vm152, %v2030, 0
    %v2035 = vsel %vm63, %v2005, 0
    %2037 = vmatprep.subr.mxu0 0.0
    %2038 = vmatpush1.msra.mxu0 %v1996
    %2039 = vmatprep.subr.mxu0 0.0
    %2040 = vmatpush1.msra.mxu0 %v1995
    %2041 = vmatprep.subr.mxu0 0.0
    %2042 = vmatpush1.msra.mxu0 %v1994
    %2043 = vmatprep.subr.mxu0 0.0
    %2044 = vmatpush1.msra.mxu0 %v1993
    %2045 = vmatprep.subr.mxu0 0.0
    %2046 = vmatpush1.msra.mxu0 %v1992
    %2047 = vmatprep.subr.mxu0 0.0
    %2048 = vmatpush1.msra.mxu0 %v1991
    %2049 = vmatprep.subr.mxu0 0.0
    %2050 = vmatpush1.msra.mxu0 %v1990
    %2051 = vmatprep.subr.mxu0 0.0
    %2052 = vmatpush1.msra.mxu0 %v1989
    %2053 = vmatprep.subr.mxu0 0.0
    %2054 = vmatpush1.msra.mxu0 %v1988
    %2055 = vmatprep.subr.mxu0 0.0
    %2056 = vmatpush1.msra.mxu0 %v1987
    %2057 = vmatprep.subr.mxu0 0.0
    %2058 = vmatpush1.msra.mxu0 %v1986
    %2059 = vmatprep.subr.mxu0 0.0
    %2060 = vmatpush1.msra.mxu0 %v1985
    %2061 = vmatprep.subr.mxu0 0.0
    %2062 = vmatpush1.msra.mxu0 %v1984
    %2063 = vmatprep.subr.mxu0 0.0
    %2064 = vmatpush1.msra.mxu0 %v1983
    %2065 = vmatprep.subr.mxu0 0.0
    %2066 = vmatpush1.msra.mxu0 %v1982
    %2067 = vmatprep.subr.mxu0 0.0
    %2068 = vmatpush1.msra.mxu0 %v1981
    %2069 = vmatprep.subr.mxu0 0.0
    %2070 = vmatpush2.msra.mxu0 0.0
    %2071 = vmatprep.subr.mxu0 0.0
    %2072 = vmatpush2.msra.mxu0 0.0
    %2073 = vmatprep.subr.mxu0 0.0
    %2074 = vmatpush2.msra.mxu0 0.0
    %2075 = vmatprep.subr.mxu0 0.0
    %2076 = vmatpush2.msra.mxu0 0.0
    %2077 = vmatprep.subr.mxu0 0.0
    %2078 = vmatpush2.msra.mxu0 0.0
    %2079 = vmatprep.subr.mxu0 0.0
    %2080 = vmatpush2.msra.mxu0 0.0
    %2081 = vmatprep.subr.mxu0 0.0
    %2082 = vmatpush2.msra.mxu0 0.0
    %2083 = vmatprep.subr.mxu0 0.0
    %2084 = vmatpush2.msra.mxu0 %v2035
    %2085 = vmatprep.subr.mxu0 0.0
    %2086 = vmatpush2.msra.mxu0 %v2004
    %2087 = vmatprep.subr.mxu0 0.0
    %2088 = vmatpush2.msra.mxu0 %v2003
    %2089 = vmatprep.subr.mxu0 0.0
    %2090 = vmatpush2.msra.mxu0 %v2002
    %2091 = vmatprep.subr.mxu0 0.0
    %2092 = vmatpush2.msra.mxu0 %v2001
    %2093 = vmatprep.subr.mxu0 0.0
    %2094 = vmatpush2.msra.mxu0 %v2000
    %2095 = vmatprep.subr.mxu0 0.0
    %2096 = vmatpush2.msra.mxu0 %v1999
    %2097 = vmatprep.subr.mxu0 0.0
    %2098 = vmatpush2.msra.mxu0 %v1998
    %2099 = vmatprep.subr.mxu0 0.0
    %2100 = vmatpush2.msra.mxu0 %v1997
    %2101 = vmatprep.mubr.f32.mxu0 %v2032
    %2102 = vmatmul.mubr.f32.gmra.mxu0 %v2023
    %v2103 = vpop.f32.mrf.mxu0
    %v2104 = vadd.f32 0.0, %v2103
    %v2105 = vpop.f32.mrf.mxu0
    %2106 = vdwg.mxu0
    %v2107 = vadd.f32 %v1975, %v2104
    %s2108 = scalar_lea.vmem [#allocation2], 22
    %v2109 = vld [vmem:[%s2108] ss:$8 sm:$0x3]
    %s2110 = scalar_lea.vmem [#allocation2], 54
    %v2111 = vld [vmem:[%s2110] ss:$8 sm:$0x3]
    %s2112 = scalar_lea.vmem %s3, 2800
    %v2113 = vld [vmem:[%s2112] sm:$0xff]
    %v2114 = vld [vmem:[%s2112 + $0x8] sm:$0xff]
    %v2115 = vld [vmem:[%s2112 + $0x10] sm:$0xff]
    %v2116 = vld [vmem:[%s2112 + $0x18] sm:$0xff]
    %v2117 = vld [vmem:[%s2112 + $0x20] sm:$0xff]
    %v2118 = vld [vmem:[%s2112 + $0x28] sm:$0xff]
    %v2119 = vld [vmem:[%s2112 + $0x30] sm:$0xff]
    %v2120 = vld [vmem:[%s2112 + $0x38] sm:$0xff]
    %v2121 = vld [vmem:[%s2112 + $0x40] sm:$0xff]
    %v2122 = vld [vmem:[%s2112 + $0x48] sm:$0xff]
    %v2123 = vld [vmem:[%s2112 + $0x50] sm:$0xff]
    %v2124 = vld [vmem:[%s2112 + $0x58] sm:$0xff]
    %v2125 = vld [vmem:[%s2112 + $0x60] sm:$0xff]
    %v2126 = vld [vmem:[%s2112 + $0x68] sm:$0xff]
    %v2127 = vld [vmem:[%s2112 + $0x70] sm:$0xff]
    %v2128 = vld [vmem:[%s2112 + $0x78] sm:$0xff]
    %v2129 = vld [vmem:[%s2112 + $0x80] sm:$0xff]
    %v2130 = vld [vmem:[%s2112 + $0x88] sm:$0xff]
    %v2131 = vld [vmem:[%s2112 + $0x90] sm:$0xff]
    %v2132 = vld [vmem:[%s2112 + $0x98] sm:$0xff]
    %v2133 = vld [vmem:[%s2112 + $0xa0] sm:$0xff]
    %v2134 = vld [vmem:[%s2112 + $0xa8] sm:$0xff]
    %v2135 = vld [vmem:[%s2112 + $0xb0] sm:$0xff]
    %v2136 = vld [vmem:[%s2112 + $0xb8] sm:$0xff]
    %v2137 = vld [vmem:[%s2112 + $0xc0] sm:$0xf]
    %v2140 = vcombine.low %v2109, %v2111
    %v2142 = vunpack.c.l.s4 1966171168
    %v2143 = vunpack.c.0.s8 %v2142
    %v2144 = vlaneseq
    %v2145 = vshrl.u32 %v2144, 7
    %v2146 = vsub.s32 %v2143, %v2145
    %v2147 = vrot.slane %v2140, %v2146
    %v2148 = vcombine.high %v2147, %v2147
    %v2150 = vunpack.c.l.s4 1966171168
    %v2151 = vunpack.c.0.s8 %v2150
    %v2152 = vlaneseq
    %v2153 = vshrl.u32 %v2152, 7
    %v2154 = vsub.s32 %v2151, %v2153
    %v2155 = vrot.slane %v2147, %v2154
    %v2157 = vunpack.c.l.s4 1966171168
    %v2158 = vunpack.c.0.s8 %v2157
    %v2159 = vlaneseq
    %v2160 = vshrl.u32 %v2159, 7
    %v2161 = vsub.s32 %v2158, %v2160
    %v2162 = vrot.slane %v2148, %v2161
    %v2164 = vsel %vm152, %v2162, 0
    %v2167 = vsel %vm63, %v2137, 0
    %2169 = vmatprep.subr.mxu0 0.0
    %2170 = vmatpush1.msra.mxu0 %v2128
    %2171 = vmatprep.subr.mxu0 0.0
    %2172 = vmatpush1.msra.mxu0 %v2127
    %2173 = vmatprep.subr.mxu0 0.0
    %2174 = vmatpush1.msra.mxu0 %v2126
    %2175 = vmatprep.subr.mxu0 0.0
    %2176 = vmatpush1.msra.mxu0 %v2125
    %2177 = vmatprep.subr.mxu0 0.0
    %2178 = vmatpush1.msra.mxu0 %v2124
    %2179 = vmatprep.subr.mxu0 0.0
    %2180 = vmatpush1.msra.mxu0 %v2123
    %2181 = vmatprep.subr.mxu0 0.0
    %2182 = vmatpush1.msra.mxu0 %v2122
    %2183 = vmatprep.subr.mxu0 0.0
    %2184 = vmatpush1.msra.mxu0 %v2121
    %2185 = vmatprep.subr.mxu0 0.0
    %2186 = vmatpush1.msra.mxu0 %v2120
    %2187 = vmatprep.subr.mxu0 0.0
    %2188 = vmatpush1.msra.mxu0 %v2119
    %2189 = vmatprep.subr.mxu0 0.0
    %2190 = vmatpush1.msra.mxu0 %v2118
    %2191 = vmatprep.subr.mxu0 0.0
    %2192 = vmatpush1.msra.mxu0 %v2117
    %2193 = vmatprep.subr.mxu0 0.0
    %2194 = vmatpush1.msra.mxu0 %v2116
    %2195 = vmatprep.subr.mxu0 0.0
    %2196 = vmatpush1.msra.mxu0 %v2115
    %2197 = vmatprep.subr.mxu0 0.0
    %2198 = vmatpush1.msra.mxu0 %v2114
    %2199 = vmatprep.subr.mxu0 0.0
    %2200 = vmatpush1.msra.mxu0 %v2113
    %2201 = vmatprep.subr.mxu0 0.0
    %2202 = vmatpush2.msra.mxu0 0.0
    %2203 = vmatprep.subr.mxu0 0.0
    %2204 = vmatpush2.msra.mxu0 0.0
    %2205 = vmatprep.subr.mxu0 0.0
    %2206 = vmatpush2.msra.mxu0 0.0
    %2207 = vmatprep.subr.mxu0 0.0
    %2208 = vmatpush2.msra.mxu0 0.0
    %2209 = vmatprep.subr.mxu0 0.0
    %2210 = vmatpush2.msra.mxu0 0.0
    %2211 = vmatprep.subr.mxu0 0.0
    %2212 = vmatpush2.msra.mxu0 0.0
    %2213 = vmatprep.subr.mxu0 0.0
    %2214 = vmatpush2.msra.mxu0 0.0
    %2215 = vmatprep.subr.mxu0 0.0
    %2216 = vmatpush2.msra.mxu0 %v2167
    %2217 = vmatprep.subr.mxu0 0.0
    %2218 = vmatpush2.msra.mxu0 %v2136
    %2219 = vmatprep.subr.mxu0 0.0
    %2220 = vmatpush2.msra.mxu0 %v2135
    %2221 = vmatprep.subr.mxu0 0.0
    %2222 = vmatpush2.msra.mxu0 %v2134
    %2223 = vmatprep.subr.mxu0 0.0
    %2224 = vmatpush2.msra.mxu0 %v2133
    %2225 = vmatprep.subr.mxu0 0.0
    %2226 = vmatpush2.msra.mxu0 %v2132
    %2227 = vmatprep.subr.mxu0 0.0
    %2228 = vmatpush2.msra.mxu0 %v2131
    %2229 = vmatprep.subr.mxu0 0.0
    %2230 = vmatpush2.msra.mxu0 %v2130
    %2231 = vmatprep.subr.mxu0 0.0
    %2232 = vmatpush2.msra.mxu0 %v2129
    %2233 = vmatprep.mubr.f32.mxu0 %v2164
    %2234 = vmatmul.mubr.f32.gmra.mxu0 %v2155
    %v2235 = vpop.f32.mrf.mxu0
    %v2236 = vadd.f32 0.0, %v2235
    %v2237 = vpop.f32.mrf.mxu0
    %2238 = vdwg.mxu0
    %v2239 = vadd.f32 %v2107, %v2236
    %s2240 = scalar_lea.vmem [#allocation2], 23
    %v2241 = vld [vmem:[%s2240] ss:$8 sm:$0x3]
    %s2242 = scalar_lea.vmem [#allocation2], 55
    %v2243 = vld [vmem:[%s2242] ss:$8 sm:$0x3]
    %s2244 = scalar_lea.vmem %s3, 3000
    %v2245 = vld [vmem:[%s2244] sm:$0xff]
    %v2246 = vld [vmem:[%s2244 + $0x8] sm:$0xff]
    %v2247 = vld [vmem:[%s2244 + $0x10] sm:$0xff]
    %v2248 = vld [vmem:[%s2244 + $0x18] sm:$0xff]
    %v2249 = vld [vmem:[%s2244 + $0x20] sm:$0xff]
    %v2250 = vld [vmem:[%s2244 + $0x28] sm:$0xff]
    %v2251 = vld [vmem:[%s2244 + $0x30] sm:$0xff]
    %v2252 = vld [vmem:[%s2244 + $0x38] sm:$0xff]
    %v2253 = vld [vmem:[%s2244 + $0x40] sm:$0xff]
    %v2254 = vld [vmem:[%s2244 + $0x48] sm:$0xff]
    %v2255 = vld [vmem:[%s2244 + $0x50] sm:$0xff]
    %v2256 = vld [vmem:[%s2244 + $0x58] sm:$0xff]
    %v2257 = vld [vmem:[%s2244 + $0x60] sm:$0xff]
    %v2258 = vld [vmem:[%s2244 + $0x68] sm:$0xff]
    %v2259 = vld [vmem:[%s2244 + $0x70] sm:$0xff]
    %v2260 = vld [vmem:[%s2244 + $0x78] sm:$0xff]
    %v2261 = vld [vmem:[%s2244 + $0x80] sm:$0xff]
    %v2262 = vld [vmem:[%s2244 + $0x88] sm:$0xff]
    %v2263 = vld [vmem:[%s2244 + $0x90] sm:$0xff]
    %v2264 = vld [vmem:[%s2244 + $0x98] sm:$0xff]
    %v2265 = vld [vmem:[%s2244 + $0xa0] sm:$0xff]
    %v2266 = vld [vmem:[%s2244 + $0xa8] sm:$0xff]
    %v2267 = vld [vmem:[%s2244 + $0xb0] sm:$0xff]
    %v2268 = vld [vmem:[%s2244 + $0xb8] sm:$0xff]
    %v2269 = vld [vmem:[%s2244 + $0xc0] sm:$0xf]
    %v2272 = vcombine.low %v2241, %v2243
    %v2274 = vunpack.c.l.s4 1966171168
    %v2275 = vunpack.c.0.s8 %v2274
    %v2276 = vlaneseq
    %v2277 = vshrl.u32 %v2276, 7
    %v2278 = vsub.s32 %v2275, %v2277
    %v2279 = vrot.slane %v2272, %v2278
    %v2280 = vcombine.high %v2279, %v2279
    %v2282 = vunpack.c.l.s4 1966171168
    %v2283 = vunpack.c.0.s8 %v2282
    %v2284 = vlaneseq
    %v2285 = vshrl.u32 %v2284, 7
    %v2286 = vsub.s32 %v2283, %v2285
    %v2287 = vrot.slane %v2279, %v2286
    %v2289 = vunpack.c.l.s4 1966171168
    %v2290 = vunpack.c.0.s8 %v2289
    %v2291 = vlaneseq
    %v2292 = vshrl.u32 %v2291, 7
    %v2293 = vsub.s32 %v2290, %v2292
    %v2294 = vrot.slane %v2280, %v2293
    %v2296 = vsel %vm152, %v2294, 0
    %v2299 = vsel %vm63, %v2269, 0
    %2301 = vmatprep.subr.mxu0 0.0
    %2302 = vmatpush1.msra.mxu0 %v2260
    %2303 = vmatprep.subr.mxu0 0.0
    %2304 = vmatpush1.msra.mxu0 %v2259
    %2305 = vmatprep.subr.mxu0 0.0
    %2306 = vmatpush1.msra.mxu0 %v2258
    %2307 = vmatprep.subr.mxu0 0.0
    %2308 = vmatpush1.msra.mxu0 %v2257
    %2309 = vmatprep.subr.mxu0 0.0
    %2310 = vmatpush1.msra.mxu0 %v2256
    %2311 = vmatprep.subr.mxu0 0.0
    %2312 = vmatpush1.msra.mxu0 %v2255
    %2313 = vmatprep.subr.mxu0 0.0
    %2314 = vmatpush1.msra.mxu0 %v2254
    %2315 = vmatprep.subr.mxu0 0.0
    %2316 = vmatpush1.msra.mxu0 %v2253
    %2317 = vmatprep.subr.mxu0 0.0
    %2318 = vmatpush1.msra.mxu0 %v2252
    %2319 = vmatprep.subr.mxu0 0.0
    %2320 = vmatpush1.msra.mxu0 %v2251
    %2321 = vmatprep.subr.mxu0 0.0
    %2322 = vmatpush1.msra.mxu0 %v2250
    %2323 = vmatprep.subr.mxu0 0.0
    %2324 = vmatpush1.msra.mxu0 %v2249
    %2325 = vmatprep.subr.mxu0 0.0
    %2326 = vmatpush1.msra.mxu0 %v2248
    %2327 = vmatprep.subr.mxu0 0.0
    %2328 = vmatpush1.msra.mxu0 %v2247
    %2329 = vmatprep.subr.mxu0 0.0
    %2330 = vmatpush1.msra.mxu0 %v2246
    %2331 = vmatprep.subr.mxu0 0.0
    %2332 = vmatpush1.msra.mxu0 %v2245
    %2333 = vmatprep.subr.mxu0 0.0
    %2334 = vmatpush2.msra.mxu0 0.0
    %2335 = vmatprep.subr.mxu0 0.0
    %2336 = vmatpush2.msra.mxu0 0.0
    %2337 = vmatprep.subr.mxu0 0.0
    %2338 = vmatpush2.msra.mxu0 0.0
    %2339 = vmatprep.subr.mxu0 0.0
    %2340 = vmatpush2.msra.mxu0 0.0
    %2341 = vmatprep.subr.mxu0 0.0
    %2342 = vmatpush2.msra.mxu0 0.0
    %2343 = vmatprep.subr.mxu0 0.0
    %2344 = vmatpush2.msra.mxu0 0.0
    %2345 = vmatprep.subr.mxu0 0.0
    %2346 = vmatpush2.msra.mxu0 0.0
    %2347 = vmatprep.subr.mxu0 0.0
    %2348 = vmatpush2.msra.mxu0 %v2299
    %2349 = vmatprep.subr.mxu0 0.0
    %2350 = vmatpush2.msra.mxu0 %v2268
    %2351 = vmatprep.subr.mxu0 0.0
    %2352 = vmatpush2.msra.mxu0 %v2267
    %2353 = vmatprep.subr.mxu0 0.0
    %2354 = vmatpush2.msra.mxu0 %v2266
    %2355 = vmatprep.subr.mxu0 0.0
    %2356 = vmatpush2.msra.mxu0 %v2265
    %2357 = vmatprep.subr.mxu0 0.0
    %2358 = vmatpush2.msra.mxu0 %v2264
    %2359 = vmatprep.subr.mxu0 0.0
    %2360 = vmatpush2.msra.mxu0 %v2263
    %2361 = vmatprep.subr.mxu0 0.0
    %2362 = vmatpush2.msra.mxu0 %v2262
    %2363 = vmatprep.subr.mxu0 0.0
    %2364 = vmatpush2.msra.mxu0 %v2261
    %2365 = vmatprep.mubr.f32.mxu0 %v2296
    %2366 = vmatmul.mubr.f32.gmra.mxu0 %v2287
    %v2367 = vpop.f32.mrf.mxu0
    %v2368 = vadd.f32 0.0, %v2367
    %v2369 = vpop.f32.mrf.mxu0
    %2370 = vdwg.mxu0
    %v2371 = vadd.f32 %v2239, %v2368
    %v2372 = vld [vmem:[%s4] sm:$0x1]
    %v2374 = vlaneseq
    %v2375 = vshrl.u32 %v2374, 7
    %v2376 = vsub.s32 0, %v2375
    %v2377 = vrot.slane %v2372, %v2376
    %v2379 = vadd.f32 %v2371, %v2377
    %v2380 = vmax.f32 %v2379, 0.0
    %v2381 = vld [vmem:[%s5] sm:$0xff]
    %v2382 = vld [vmem:[%s5 + $0x8] sm:$0xff]
    %v2383 = vld [vmem:[%s5 + $0x10] sm:$0xff]
    %v2384 = vld [vmem:[%s5 + $0x18] sm:$0xff]
    %v2385 = vld [vmem:[%s5 + $0x20] sm:$0xff]
    %v2386 = vld [vmem:[%s5 + $0x28] sm:$0xff]
    %v2387 = vld [vmem:[%s5 + $0x30] sm:$0xff]
    %v2388 = vld [vmem:[%s5 + $0x38] sm:$0xff]
    %v2389 = vld [vmem:[%s5 + $0x40] sm:$0xff]
    %v2390 = vld [vmem:[%s5 + $0x48] sm:$0xff]
    %v2391 = vld [vmem:[%s5 + $0x50] sm:$0xff]
    %v2392 = vld [vmem:[%s5 + $0x58] sm:$0xff]
    %v2393 = vld [vmem:[%s5 + $0x60] sm:$0xff]
    %v2394 = vld [vmem:[%s5 + $0x68] sm:$0xff]
    %v2395 = vld [vmem:[%s5 + $0x70] sm:$0xff]
    %v2396 = vld [vmem:[%s5 + $0x78] sm:$0xff]
    %v2397 = vld [vmem:[%s6] sm:$0x1]
    %v2399 = vlaneseq
    %v2400 = vshrl.u32 %v2399, 7
    %v2401 = vsub.s32 0, %v2400
    %v2402 = vrot.slane %v2397, %v2401
    %2404 = vmatprep.subr.mxu0 0.0
    %2405 = vmatpush1.msra.mxu0 %v2396
    %2406 = vmatprep.subr.mxu0 0.0
    %2407 = vmatpush1.msra.mxu0 %v2395
    %2408 = vmatprep.subr.mxu0 0.0
    %2409 = vmatpush1.msra.mxu0 %v2394
    %2410 = vmatprep.subr.mxu0 0.0
    %2411 = vmatpush1.msra.mxu0 %v2393
    %2412 = vmatprep.subr.mxu0 0.0
    %2413 = vmatpush1.msra.mxu0 %v2392
    %2414 = vmatprep.subr.mxu0 0.0
    %2415 = vmatpush1.msra.mxu0 %v2391
    %2416 = vmatprep.subr.mxu0 0.0
    %2417 = vmatpush1.msra.mxu0 %v2390
    %2418 = vmatprep.subr.mxu0 0.0
    %2419 = vmatpush1.msra.mxu0 %v2389
    %2420 = vmatprep.subr.mxu0 0.0
    %2421 = vmatpush1.msra.mxu0 %v2388
    %2422 = vmatprep.subr.mxu0 0.0
    %2423 = vmatpush1.msra.mxu0 %v2387
    %2424 = vmatprep.subr.mxu0 0.0
    %2425 = vmatpush1.msra.mxu0 %v2386
    %2426 = vmatprep.subr.mxu0 0.0
    %2427 = vmatpush1.msra.mxu0 %v2385
    %2428 = vmatprep.subr.mxu0 0.0
    %2429 = vmatpush1.msra.mxu0 %v2384
    %2430 = vmatprep.subr.mxu0 0.0
    %2431 = vmatpush1.msra.mxu0 %v2383
    %2432 = vmatprep.subr.mxu0 0.0
    %2433 = vmatpush1.msra.mxu0 %v2382
    %2434 = vmatprep.subr.mxu0 0.0
    %2435 = vmatpush1.msra.mxu0 %v2381
    %2436 = vmatprep.subr.mxu0 0.0
    %2437 = vmatpush2.msra.mxu0 0.0
    %2438 = vmatprep.subr.mxu0 0.0
    %2439 = vmatpush2.msra.mxu0 0.0
    %2440 = vmatprep.subr.mxu0 0.0
    %2441 = vmatpush2.msra.mxu0 0.0
    %2442 = vmatprep.subr.mxu0 0.0
    %2443 = vmatpush2.msra.mxu0 0.0
    %2444 = vmatprep.subr.mxu0 0.0
    %2445 = vmatpush2.msra.mxu0 0.0
    %2446 = vmatprep.subr.mxu0 0.0
    %2447 = vmatpush2.msra.mxu0 0.0
    %2448 = vmatprep.subr.mxu0 0.0
    %2449 = vmatpush2.msra.mxu0 0.0
    %2450 = vmatprep.subr.mxu0 0.0
    %2451 = vmatpush2.msra.mxu0 0.0
    %2452 = vmatprep.subr.mxu0 0.0
    %2453 = vmatpush2.msra.mxu0 0.0
    %2454 = vmatprep.subr.mxu0 0.0
    %2455 = vmatpush2.msra.mxu0 0.0
    %2456 = vmatprep.subr.mxu0 0.0
    %2457 = vmatpush2.msra.mxu0 0.0
    %2458 = vmatprep.subr.mxu0 0.0
    %2459 = vmatpush2.msra.mxu0 0.0
    %2460 = vmatprep.subr.mxu0 0.0
    %2461 = vmatpush2.msra.mxu0 0.0
    %2462 = vmatprep.subr.mxu0 0.0
    %2463 = vmatpush2.msra.mxu0 0.0
    %2464 = vmatprep.subr.mxu0 0.0
    %2465 = vmatpush2.msra.mxu0 0.0
    %2466 = vmatprep.subr.mxu0 0.0
    %2467 = vmatpush2.msra.mxu0 0.0
    %2468 = vmatprep.mubr.f32.mxu0 0.0
    %2469 = vmatmul.mubr.f32.gmra.mxu0 %v2380
    %v2470 = vpop.f32.mrf.mxu0
    %v2471 = vadd.f32 %v2402, %v2470
    %v2472 = vpop.f32.mrf.mxu0
    %2473 = vdwg.mxu0
    %v2474 = vmax.f32 %v2471, 0.0
    %2475 = vst [vmem:[#allocation3] sm:$0x3] %v2474
    // Predicated region
    $region30: #{_forward.1} parent=1 // pred_check
      _
    $region31: #{_forward.1} parent=1 // pred_check_branch
      %2477 = sbr.rel (0) target = $region33
    $region32: #{_forward.1} parent=1 // pred_region
      %s2479 = ssub.s32 32, 32
      %2480 = vsyncadd [#allocation4], %s2479
      %s2482 = sshll.u32 [#allocation3], 4
      %s2483 = int_to_ptr.vmem [resolvable:$true] %s2482
      %2485 = dma.vmem_to_hbm [thread:$0]  %s2483, 32, %s7, [#allocation4]
    $region33: #{_forward.1} parent=1 // pred_fallthru
      _
    // Predicated region
    $region34: #{_forward.1} parent=1 // pred_check
      _
    $region35: #{_forward.1} parent=1 // pred_check_branch
      %2487 = sbr.rel (0) target = $region37
    $region36: #{_forward.1} parent=1 // pred_region
      %2488 = dma.done [#allocation4], 32
    $region37: #{_forward.1} parent=1 // pred_fallthru
      _
    %2489 = vsyncpa [#allocation4], 1

</llo_original>
